<compile_context>
chip_gen: v7x
topology: tpu7x:2x2x1
jax: 0.10.0
libtpu: 0.0.40
codegen_flags: <defaults>
</compile_context>

<pallas_src>
import numpy as np
import jax
import jax.numpy as jnp
from jax.experimental import pallas as pl
from jax.experimental.pallas import tpu as pltpu

K = 3
STRIDE = 2
PAD = 1
NUM_LAYERS = 8

LANE = 128              # keep 128: right fix for MXU occupancy is more rows, not wider zero-pad
SUBLANE = 8
ROW_TILE = 512          # batch rows per grid step (1 MB f32 activation tile)
WEIGHT_DTYPE = jnp.bfloat16


def _round_up(x, m):
    return ((x + m - 1) // m) * m


def _cdiv(a, b):
    return -(-a // b)


def _device_kind():
    try:
        return jax.devices()[0].device_kind.lower()
    except Exception:
        return ""


_KIND = _device_kind()
# v7x has 2 TensorCores per chip -> keep a >=2-step parallel grid when possible.
_TWO_CORES = "v7" in _KIND
# bf16 elementwise only where the VPU supports it (v6e / v7x); f32 elsewhere.
_BF16_ELEMWISE = ("v6" in _KIND) or ("v7" in _KIND)


# ----------------------------------------------------------------------------
# Glue: lower conv / transposed-conv (k=3, s=2, p=1) to dense matrices.
# ----------------------------------------------------------------------------
def conv1d_as_matrix(w, L_in):
    """w: (C_out, C_in, K) -> M: (L_in*C_in, L_out*C_out), L_out."""
    C_out, C_in, k = w.shape
    L_out = (L_in + 2 * PAD - k) // STRIDE + 1
    M = np.zeros((L_in * C_in, L_out * C_out), np.float32)
    for lo in range(L_out):
        for kk in range(k):
            li = lo * STRIDE + kk - PAD
            if 0 <= li < L_in:
                for ci in range(C_in):
                    for co in range(C_out):
                        M[li * C_in + ci, lo * C_out + co] = w[co, ci, kk]
    return M, L_out


def convtr1d_as_matrix(w, L_in):
    """w: (C_in, C_out, K) -> M: (L_in*C_in, L_out*C_out), L_out."""
    C_in, C_out, k = w.shape
    L_out = (L_in - 1) * STRIDE - 2 * PAD + k  # output_padding = 0
    M = np.zeros((L_in * C_in, L_out * C_out), np.float32)
    for li in range(L_in):
        for kk in range(k):
            lo = li * STRIDE + kk - PAD
            if 0 <= lo < L_out:
                for ci in range(C_in):
                    for co in range(C_out):
                        M[li * C_in + ci, lo * C_out + co] += w[ci, co, kk]
    return M, L_out


def build_dense_params(layers, L_in):
    """Lane-padded dense matrices (bf16) + one packed lane-padded bias array (f32)."""
    mats, bias_rows = [], []
    cur_L = L_in
    new_C = 1
    for kind, w, b in layers:
        wn = np.asarray(w, np.float32)
        bn = np.asarray(b, np.float32)
        if kind == "conv":
            M, new_L = conv1d_as_matrix(wn, cur_L)
            new_C = wn.shape[0]
        else:
            M, new_L = convtr1d_as_matrix(wn, cur_L)
            new_C = wn.shape[1]
        d_in_real, d_out_real = M.shape
        d_in_p = _round_up(d_in_real, LANE)
        d_out_p = _round_up(d_out_real, LANE)
        Mp = np.zeros((d_in_p, d_out_p), np.float32)
        Mp[:d_in_real, :d_out_real] = M
        mats.append(jnp.asarray(Mp, WEIGHT_DTYPE))
        brow = np.zeros((d_out_p,), np.float32)
        brow[:d_out_real] = np.tile(bn, new_L)      # b_flat[l*C + c] = b[c]
        bias_rows.append(brow)
        cur_L = new_L

    d_in_pad0 = _round_up(L_in * 1, LANE)           # first layer has C_in = 1
    max_w = max(br.shape[0] for br in bias_rows)
    bias_packed = np.zeros((_round_up(NUM_LAYERS, SUBLANE), max_w), np.float32)
    for i, br in enumerate(bias_rows):
        bias_packed[i, :br.shape[0]] = br

    out_len = cur_L * new_C                          # final C_out = 1 -> 49
    d_out_pad_final = mats[-1].shape[1]
    return mats, jnp.asarray(bias_packed), d_in_pad0, d_out_pad_final, out_len


# ----------------------------------------------------------------------------
# Pallas kernel: 8 x (bf16 matmul, f32 accum) + bias + ReLU / Sigmoid.
# ----------------------------------------------------------------------------
def _ae_kernel(*refs):
    x_ref = refs[0]
    w_refs = refs[1:1 + NUM_LAYERS]
    b_ref = refs[1 + NUM_LAYERS]
    out_ref = refs[2 + NUM_LAYERS]

    h = x_ref[...]                                        # (TM, D0p) bf16
    for i in range(NUM_LAYERS):
        w = w_refs[i]
        d_out = w.shape[1]
        acc = jnp.dot(h.astype(WEIGHT_DTYPE), w[...],
                      preferred_element_type=jnp.float32)  # MXU, f32 accum
        b = b_ref[i:i + 1, :d_out]                          # (1, d_out) f32, static slice
        if i < NUM_LAYERS - 1:
            if _BF16_ELEMWISE:
                h = jnp.maximum(acc.astype(jnp.bfloat16) + b.astype(jnp.bfloat16), 0)
            else:
                h = jnp.maximum(acc + b, 0.0)               # ReLU (VPU, f32)
        else:
            # sigmoid = 1 / (1 + exp(-z)): exp on EUP, approx reciprocal (EUP)
            z = acc + b
            h = pl.reciprocal(1.0 + jnp.exp(-z), approx=True)
    out_ref[...] = h.astype(out_ref.dtype)


def autoencoder_forward(x_nchw, mats, bias_packed, d_in_pad, d_out_pad, out_len,
                        row_tile=ROW_TILE):
    """x_nchw: (N, 1, L) float32 -> (N, 1, out_len) float32."""
    N = x_nchw.shape[0]
    L = x_nchw.shape[1] * x_nchw.shape[2]                 # C_in = 1
    x_flat = x_nchw.reshape(N, L).astype(WEIGHT_DTYPE)    # bf16 halves input DMA

    # Pad batch only to a sublane multiple; balance tiles so the last one isn't
    # mostly padding.  Keep >=2 parallel steps on 2-core chips (v7x).
    n_rows = _round_up(max(N, 1), SUBLANE)
    n_tiles = _cdiv(n_rows, row_tile)
    if _TWO_CORES and n_rows >= 2 * SUBLANE:
        n_tiles = max(n_tiles, 2)
    tm = _round_up(_cdiv(n_rows, n_tiles), SUBLANE)
    n_pad = n_tiles * tm

    # Single fused pad (avoids a zeros+scatter HBM materialization).
    x_p = jnp.pad(x_flat, ((0, n_pad - N), (0, d_in_pad - L)))

    grid = (n_tiles,)
    in_specs = [pl.BlockSpec((tm, d_in_pad), lambda i: (i, 0))]
    # Weights / packed bias: constant index maps -> DMA'd once, resident in VMEM.
    for m in mats:
        in_specs.append(pl.BlockSpec(m.shape, lambda i: (0, 0)))
    in_specs.append(pl.BlockSpec(bias_packed.shape, lambda i: (0, 0)))
    out_spec = pl.BlockSpec((tm, d_out_pad), lambda i: (i, 0))

    out_p = pl.pallas_call(
        _ae_kernel,
        out_shape=jax.ShapeDtypeStruct((n_pad, d_out_pad), jnp.float32),
        grid=grid,
        in_specs=in_specs,
        out_specs=out_spec,
        compiler_params=pltpu.CompilerParams(
            dimension_semantics=("parallel",)),   # megacore sharding on v7x
    )(x_p, *mats, bias_packed)
    return out_p[:N, :out_len].reshape(N, 1, out_len)


# ----------------------------------------------------------------------------
# Pure-numpy reference (direct PyTorch-semantics conv / conv-transpose).
# ----------------------------------------------------------------------------
def ref_conv1d(x, w, b):
    N, C_in, L_in = x.shape
    C_out = w.shape[0]
    L_out = (L_in + 2 * PAD - K) // STRIDE + 1
    xp = np.zeros((N, C_in, L_in + 2 * PAD), np.float32)
    xp[:, :, PAD:PAD + L_in] = x
    out = np.zeros((N, C_out, L_out), np.float32)
    for lo in range(L_out):
        seg = xp[:, :, lo * STRIDE:lo * STRIDE + K]
        out[:, :, lo] = np.einsum("nck,ock->no", seg, w) + b
    return out


def ref_convtr1d(x, w, b):
    N, C_in, L_in = x.shape
    C_out = w.shape[1]
    full = (L_in - 1) * STRIDE + K
    L_out = full - 2 * PAD
    buf = np.zeros((N, C_out, full), np.float32)
    for li in range(L_in):
        buf[:, :, li * STRIDE:li * STRIDE + K] += np.einsum(
            "nc,cok->nok", x[:, :, li], w)
    return buf[:, :, PAD:PAD + L_out] + b[None, :, None]


def ref_forward(x, layers):
    h = np.asarray(x, np.float32)
    for i, (kind, w, b) in enumerate(layers):
        if kind == "conv":
            h = ref_conv1d(h, np.asarray(w), np.asarray(b))
        else:
            h = ref_convtr1d(h, np.asarray(w), np.asarray(b))
        if i < NUM_LAYERS - 1:
            h = np.maximum(h, 0.0)
        else:
            h = 1.0 / (1.0 + np.exp(-h))
    return h


# ----------------------------------------------------------------------------
if __name__ == "__main__":
    L = 64  # input (N, 1, L), matching nn.Conv1d(1, ...) in-channels

    key = jax.random.PRNGKey(0)

    # Deterministic parameter init (PyTorch-style uniform bounds).
    enc = [(1, 16), (16, 8), (8, 4), (4, 2)]
    dec = [(2, 4), (4, 8), (8, 16), (16, 1)]
    layers = []
    for cin, cout in enc:
        key, k1, k2 = jax.random.split(key, 3)
        bound = 1.0 / np.sqrt(cin * K)
        w = jax.random.uniform(k1, (cout, cin, K), jnp.float32, -bound, bound)
        b = jax.random.uniform(k2, (cout,), jnp.float32, -bound, bound)
        layers.append(("conv", w, b))
    for cin, cout in dec:
        key, k1, k2 = jax.random.split(key, 3)
        bound = 1.0 / np.sqrt(cin * K)
        w = jax.random.uniform(k1, (cin, cout, K), jnp.float32, -bound, bound)
        b = jax.random.uniform(k2, (cout,), jnp.float32, -bound, bound)
        layers.append(("convtr", w, b))

    # Build lane-padded dense conv matrices + packed biases (glue, runs once).
    mats, bias_packed, d_in_pad, d_out_pad, out_len = build_dense_params(layers, L)
    # widths: 64 -> 32 -> 16 -> 8 -> 4 -> 7 -> 13 -> 25 -> 49 (out_len == 49)

    # N=2: tiny-batch path (single 8-row tile); N=200: single 200-row tile on
    # 1-TC chips (no padding waste), two ~104-row parallel tiles on v7x.
    for N in (2, 200):
        key, kx = jax.random.split(key)
        x = jax.random.uniform(kx, (N, 1, L), jnp.float32)

        y = autoencoder_forward(x, mats, bias_packed, d_in_pad, d_out_pad, out_len)
        y = jax.block_until_ready(y)

        y_ref = ref_forward(np.asarray(x), layers)
        assert y.shape == (N, 1, out_len), y.shape
        # bf16 weights/activations into the MXU (f32 accumulation) + approx
        # reciprocal in the sigmoid -> loose tolerance vs the pure-f32 reference.
        np.testing.assert_allclose(np.asarray(y), y_ref, rtol=2e-2, atol=2e-2)

    print("KERNEL_OK")
</pallas_src>

<mosaic_0001>
module attributes {stable_mosaic.version = 11 : i64} {
  func.func @_ae_kernel(%arg0: i32, %arg1: memref<8x128xbf16, #tpu.memory_space<vmem>>, %arg2: memref<128x512xbf16, #tpu.memory_space<vmem>>, %arg3: memref<512x128xbf16, #tpu.memory_space<vmem>>, %arg4: memref<128x128xbf16, #tpu.memory_space<vmem>>, %arg5: memref<128x128xbf16, #tpu.memory_space<vmem>>, %arg6: memref<128x128xbf16, #tpu.memory_space<vmem>>, %arg7: memref<128x128xbf16, #tpu.memory_space<vmem>>, %arg8: memref<128x512xbf16, #tpu.memory_space<vmem>>, %arg9: memref<512x128xbf16, #tpu.memory_space<vmem>>, %arg10: memref<8x512xf32, #tpu.memory_space<vmem>>, %arg11: memref<8x128xf32, #tpu.memory_space<vmem>>) attributes {dimension_semantics = [#tpu.dimension_semantics<parallel>], iteration_bounds = array<i64: 1>, scalar_prefetch = 0 : i64, scratch_operands = 0 : i64, tpu.core_type = #tpu.core_type<tc>, window_params = [{transform_indices = @transform_0, window_bounds = array<i64: 8, 128>}, {pipeline_mode = #tpu.pipeline_mode<synchronous>, transform_indices = @transform_1, window_bounds = array<i64: 128, 512>}, {pipeline_mode = #tpu.pipeline_mode<synchronous>, transform_indices = @transform_2, window_bounds = array<i64: 512, 128>}, {pipeline_mode = #tpu.pipeline_mode<synchronous>, transform_indices = @transform_3, window_bounds = array<i64: 128, 128>}, {pipeline_mode = #tpu.pipeline_mode<synchronous>, transform_indices = @transform_4, window_bounds = array<i64: 128, 128>}, {pipeline_mode = #tpu.pipeline_mode<synchronous>, transform_indices = @transform_5, window_bounds = array<i64: 128, 128>}, {pipeline_mode = #tpu.pipeline_mode<synchronous>, transform_indices = @transform_6, window_bounds = array<i64: 128, 128>}, {pipeline_mode = #tpu.pipeline_mode<synchronous>, transform_indices = @transform_7, window_bounds = array<i64: 128, 512>}, {pipeline_mode = #tpu.pipeline_mode<synchronous>, transform_indices = @transform_8, window_bounds = array<i64: 512, 128>}, {pipeline_mode = #tpu.pipeline_mode<synchronous>, transform_indices = @transform_9, window_bounds = array<i64: 8, 512>}, {transform_indices = @transform_10, window_bounds = array<i64: 8, 128>}]} {
    %c0 = arith.constant 0 : index
    %c0_0 = arith.constant 0 : index
    %0 = vector.load %arg1[%c0, %c0_0] : memref<8x128xbf16, #tpu.memory_space<vmem>>, vector<8x128xbf16>
    %c0_1 = arith.constant 0 : index
    %c0_2 = arith.constant 0 : index
    %1 = vector.load %arg2[%c0_1, %c0_2] : memref<128x512xbf16, #tpu.memory_space<vmem>>, vector<128x512xbf16>
    %cst = arith.constant dense<0.000000e+00> : vector<8x512xf32>
    %2 = tpu.matmul %0, %1, %cst {dimension_numbers = #tpu.dot_dimension_numbers<[1], [0], [0], [1], [0, 0, 1, 1], [], []>} : vector<8x128xbf16>, vector<128x512xbf16>, vector<8x512xf32> -> vector<8x512xf32>
    %c0_3 = arith.constant 0 : index
    %c0_4 = arith.constant 0 : index
    %3 = vector.load %arg10[%c0_3, %c0_4] : memref<8x512xf32, #tpu.memory_space<vmem>>, vector<1x512xf32>
    %4 = vector.broadcast %3 : vector<1x512xf32> to vector<8x512xf32>
    %5 = arith.addf %2, %4 : vector<8x512xf32>
    %cst_5 = arith.constant 0.000000e+00 : f32
    %6 = vector.broadcast %cst_5 : f32 to vector<8x512xf32>
    %7 = arith.maximumf %5, %6 : vector<8x512xf32>
    %8 = arith.truncf %7 : vector<8x512xf32> to vector<8x512xbf16>
    %c0_6 = arith.constant 0 : index
    %c0_7 = arith.constant 0 : index
    %9 = vector.load %arg3[%c0_6, %c0_7] : memref<512x128xbf16, #tpu.memory_space<vmem>>, vector<512x128xbf16>
    %cst_8 = arith.constant dense<0.000000e+00> : vector<8x128xf32>
    %10 = tpu.matmul %8, %9, %cst_8 {dimension_numbers = #tpu.dot_dimension_numbers<[1], [0], [0], [1], [0, 0, 1, 1], [], []>} : vector<8x512xbf16>, vector<512x128xbf16>, vector<8x128xf32> -> vector<8x128xf32>
    %c1 = arith.constant 1 : index
    %c0_9 = arith.constant 0 : index
    %11 = vector.load %arg10[%c1, %c0_9] : memref<8x512xf32, #tpu.memory_space<vmem>>, vector<1x128xf32>
    %12 = vector.broadcast %11 : vector<1x128xf32> to vector<8x128xf32>
    %13 = arith.addf %10, %12 : vector<8x128xf32>
    %cst_10 = arith.constant 0.000000e+00 : f32
    %14 = vector.broadcast %cst_10 : f32 to vector<8x128xf32>
    %15 = arith.maximumf %13, %14 : vector<8x128xf32>
    %16 = arith.truncf %15 : vector<8x128xf32> to vector<8x128xbf16>
    %c0_11 = arith.constant 0 : index
    %c0_12 = arith.constant 0 : index
    %17 = vector.load %arg4[%c0_11, %c0_12] : memref<128x128xbf16, #tpu.memory_space<vmem>>, vector<128x128xbf16>
    %cst_13 = arith.constant dense<0.000000e+00> : vector<8x128xf32>
    %18 = tpu.matmul %16, %17, %cst_13 {dimension_numbers = #tpu.dot_dimension_numbers<[1], [0], [0], [1], [0, 0, 1, 1], [], []>} : vector<8x128xbf16>, vector<128x128xbf16>, vector<8x128xf32> -> vector<8x128xf32>
    %c2 = arith.constant 2 : index
    %c0_14 = arith.constant 0 : index
    %19 = vector.load %arg10[%c2, %c0_14] : memref<8x512xf32, #tpu.memory_space<vmem>>, vector<1x128xf32>
    %20 = vector.broadcast %19 : vector<1x128xf32> to vector<8x128xf32>
    %21 = arith.addf %18, %20 : vector<8x128xf32>
    %cst_15 = arith.constant 0.000000e+00 : f32
    %22 = vector.broadcast %cst_15 : f32 to vector<8x128xf32>
    %23 = arith.maximumf %21, %22 : vector<8x128xf32>
    %24 = arith.truncf %23 : vector<8x128xf32> to vector<8x128xbf16>
    %c0_16 = arith.constant 0 : index
    %c0_17 = arith.constant 0 : index
    %25 = vector.load %arg5[%c0_16, %c0_17] : memref<128x128xbf16, #tpu.memory_space<vmem>>, vector<128x128xbf16>
    %cst_18 = arith.constant dense<0.000000e+00> : vector<8x128xf32>
    %26 = tpu.matmul %24, %25, %cst_18 {dimension_numbers = #tpu.dot_dimension_numbers<[1], [0], [0], [1], [0, 0, 1, 1], [], []>} : vector<8x128xbf16>, vector<128x128xbf16>, vector<8x128xf32> -> vector<8x128xf32>
    %c3 = arith.constant 3 : index
    %c0_19 = arith.constant 0 : index
    %27 = vector.load %arg10[%c3, %c0_19] : memref<8x512xf32, #tpu.memory_space<vmem>>, vector<1x128xf32>
    %28 = vector.broadcast %27 : vector<1x128xf32> to vector<8x128xf32>
    %29 = arith.addf %26, %28 : vector<8x128xf32>
    %cst_20 = arith.constant 0.000000e+00 : f32
    %30 = vector.broadcast %cst_20 : f32 to vector<8x128xf32>
    %31 = arith.maximumf %29, %30 : vector<8x128xf32>
    %32 = arith.truncf %31 : vector<8x128xf32> to vector<8x128xbf16>
    %c0_21 = arith.constant 0 : index
    %c0_22 = arith.constant 0 : index
    %33 = vector.load %arg6[%c0_21, %c0_22] : memref<128x128xbf16, #tpu.memory_space<vmem>>, vector<128x128xbf16>
    %cst_23 = arith.constant dense<0.000000e+00> : vector<8x128xf32>
    %34 = tpu.matmul %32, %33, %cst_23 {dimension_numbers = #tpu.dot_dimension_numbers<[1], [0], [0], [1], [0, 0, 1, 1], [], []>} : vector<8x128xbf16>, vector<128x128xbf16>, vector<8x128xf32> -> vector<8x128xf32>
    %c4 = arith.constant 4 : index
    %c0_24 = arith.constant 0 : index
    %35 = vector.load %arg10[%c4, %c0_24] : memref<8x512xf32, #tpu.memory_space<vmem>>, vector<1x128xf32>
    %36 = vector.broadcast %35 : vector<1x128xf32> to vector<8x128xf32>
    %37 = arith.addf %34, %36 : vector<8x128xf32>
    %cst_25 = arith.constant 0.000000e+00 : f32
    %38 = vector.broadcast %cst_25 : f32 to vector<8x128xf32>
    %39 = arith.maximumf %37, %38 : vector<8x128xf32>
    %40 = arith.truncf %39 : vector<8x128xf32> to vector<8x128xbf16>
    %c0_26 = arith.constant 0 : index
    %c0_27 = arith.constant 0 : index
    %41 = vector.load %arg7[%c0_26, %c0_27] : memref<128x128xbf16, #tpu.memory_space<vmem>>, vector<128x128xbf16>
    %cst_28 = arith.constant dense<0.000000e+00> : vector<8x128xf32>
    %42 = tpu.matmul %40, %41, %cst_28 {dimension_numbers = #tpu.dot_dimension_numbers<[1], [0], [0], [1], [0, 0, 1, 1], [], []>} : vector<8x128xbf16>, vector<128x128xbf16>, vector<8x128xf32> -> vector<8x128xf32>
    %c5 = arith.constant 5 : index
    %c0_29 = arith.constant 0 : index
    %43 = vector.load %arg10[%c5, %c0_29] : memref<8x512xf32, #tpu.memory_space<vmem>>, vector<1x128xf32>
    %44 = vector.broadcast %43 : vector<1x128xf32> to vector<8x128xf32>
    %45 = arith.addf %42, %44 : vector<8x128xf32>
    %cst_30 = arith.constant 0.000000e+00 : f32
    %46 = vector.broadcast %cst_30 : f32 to vector<8x128xf32>
    %47 = arith.maximumf %45, %46 : vector<8x128xf32>
    %48 = arith.truncf %47 : vector<8x128xf32> to vector<8x128xbf16>
    %c0_31 = arith.constant 0 : index
    %c0_32 = arith.constant 0 : index
    %49 = vector.load %arg8[%c0_31, %c0_32] : memref<128x512xbf16, #tpu.memory_space<vmem>>, vector<128x512xbf16>
    %cst_33 = arith.constant dense<0.000000e+00> : vector<8x512xf32>
    %50 = tpu.matmul %48, %49, %cst_33 {dimension_numbers = #tpu.dot_dimension_numbers<[1], [0], [0], [1], [0, 0, 1, 1], [], []>} : vector<8x128xbf16>, vector<128x512xbf16>, vector<8x512xf32> -> vector<8x512xf32>
    %c6 = arith.constant 6 : index
    %c0_34 = arith.constant 0 : index
    %51 = vector.load %arg10[%c6, %c0_34] : memref<8x512xf32, #tpu.memory_space<vmem>>, vector<1x512xf32>
    %52 = vector.broadcast %51 : vector<1x512xf32> to vector<8x512xf32>
    %53 = arith.addf %50, %52 : vector<8x512xf32>
    %cst_35 = arith.constant 0.000000e+00 : f32
    %54 = vector.broadcast %cst_35 : f32 to vector<8x512xf32>
    %55 = arith.maximumf %53, %54 : vector<8x512xf32>
    %56 = arith.truncf %55 : vector<8x512xf32> to vector<8x512xbf16>
    %c0_36 = arith.constant 0 : index
    %c0_37 = arith.constant 0 : index
    %57 = vector.load %arg9[%c0_36, %c0_37] : memref<512x128xbf16, #tpu.memory_space<vmem>>, vector<512x128xbf16>
    %cst_38 = arith.constant dense<0.000000e+00> : vector<8x128xf32>
    %58 = tpu.matmul %56, %57, %cst_38 {dimension_numbers = #tpu.dot_dimension_numbers<[1], [0], [0], [1], [0, 0, 1, 1], [], []>} : vector<8x512xbf16>, vector<512x128xbf16>, vector<8x128xf32> -> vector<8x128xf32>
    %c7 = arith.constant 7 : index
    %c0_39 = arith.constant 0 : index
    %59 = vector.load %arg10[%c7, %c0_39] : memref<8x512xf32, #tpu.memory_space<vmem>>, vector<1x128xf32>
    %60 = vector.broadcast %59 : vector<1x128xf32> to vector<8x128xf32>
    %61 = arith.addf %58, %60 : vector<8x128xf32>
    %cst_40 = arith.constant 0.000000e+00 : f32
    %62 = vector.broadcast %cst_40 : f32 to vector<8x128xf32>
    %63 = arith.subf %62, %61 : vector<8x128xf32>
    %64 = math.exp %63 : vector<8x128xf32>
    %cst_41 = arith.constant 1.000000e+00 : f32
    %65 = vector.broadcast %cst_41 : f32 to vector<8x128xf32>
    %66 = arith.addf %65, %64 : vector<8x128xf32>
    %67 = tpu.reciprocal %66 {approx = true} : vector<8x128xf32> -> vector<8x128xf32>
    %c0_42 = arith.constant 0 : index
    %c0_43 = arith.constant 0 : index
    %68 = vector.load %arg11[%c0_42, %c0_43] : memref<8x128xf32, #tpu.memory_space<vmem>>, vector<8x128xf32>
    tpu.vector_store %arg11[%c0_42, %c0_43], %67 {strides = array<i32>} : memref<8x128xf32, #tpu.memory_space<vmem>>, vector<8x128xf32>,
    return
  }
  func.func @transform_0(%arg0: i32) -> (i32, i32) {
    %c0_i32 = arith.constant 0 : i32
    %c0_i32_0 = arith.constant 0 : i32
    return %arg0, %c0_i32 : i32, i32
  }
  func.func @transform_1(%arg0: i32) -> (i32, i32) {
    %c0_i32 = arith.constant 0 : i32
    %c0_i32_0 = arith.constant 0 : i32
    %c0_i32_1 = arith.constant 0 : i32
    return %c0_i32, %c0_i32_0 : i32, i32
  }
  func.func @transform_2(%arg0: i32) -> (i32, i32) {
    %c0_i32 = arith.constant 0 : i32
    %c0_i32_0 = arith.constant 0 : i32
    %c0_i32_1 = arith.constant 0 : i32
    return %c0_i32, %c0_i32_0 : i32, i32
  }
  func.func @transform_3(%arg0: i32) -> (i32, i32) {
    %c0_i32 = arith.constant 0 : i32
    %c0_i32_0 = arith.constant 0 : i32
    %c0_i32_1 = arith.constant 0 : i32
    return %c0_i32, %c0_i32_0 : i32, i32
  }
  func.func @transform_4(%arg0: i32) -> (i32, i32) {
    %c0_i32 = arith.constant 0 : i32
    %c0_i32_0 = arith.constant 0 : i32
    %c0_i32_1 = arith.constant 0 : i32
    return %c0_i32, %c0_i32_0 : i32, i32
  }
  func.func @transform_5(%arg0: i32) -> (i32, i32) {
    %c0_i32 = arith.constant 0 : i32
    %c0_i32_0 = arith.constant 0 : i32
    %c0_i32_1 = arith.constant 0 : i32
    return %c0_i32, %c0_i32_0 : i32, i32
  }
  func.func @transform_6(%arg0: i32) -> (i32, i32) {
    %c0_i32 = arith.constant 0 : i32
    %c0_i32_0 = arith.constant 0 : i32
    %c0_i32_1 = arith.constant 0 : i32
    return %c0_i32, %c0_i32_0 : i32, i32
  }
  func.func @transform_7(%arg0: i32) -> (i32, i32) {
    %c0_i32 = arith.constant 0 : i32
    %c0_i32_0 = arith.constant 0 : i32
    %c0_i32_1 = arith.constant 0 : i32
    return %c0_i32, %c0_i32_0 : i32, i32
  }
  func.func @transform_8(%arg0: i32) -> (i32, i32) {
    %c0_i32 = arith.constant 0 : i32
    %c0_i32_0 = arith.constant 0 : i32
    %c0_i32_1 = arith.constant 0 : i32
    return %c0_i32, %c0_i32_0 : i32, i32
  }
  func.func @transform_9(%arg0: i32) -> (i32, i32) {
    %c0_i32 = arith.constant 0 : i32
    %c0_i32_0 = arith.constant 0 : i32
    %c0_i32_1 = arith.constant 0 : i32
    return %c0_i32, %c0_i32_0 : i32, i32
  }
  func.func @transform_10(%arg0: i32) -> (i32, i32) {
    %c0_i32 = arith.constant 0 : i32
    %c0_i32_0 = arith.constant 0 : i32
    return %arg0, %c0_i32 : i32, i32
  }
}

</mosaic_0001>

<llo_original>
// kernel: tpu_custom_call.1
$region0: #{tpu_custom_call.1}
  #allocation0 [shape = 'u32[]', space=smem, size = 0x4, offset = 0x4, fixed_abs, tag = 'smem constant byte address 0x4 - core index']
  #allocation1 [shape = 'u32[144,128]{1,0:T(1,128)}', space=vmem, size = 0x12000, scoped, tag = 'internal scratch']
  %s0 = inlined_call_operand.hbm [shape: bf16[8,128], index: 0, kind: input, shape index: {}]
  %s1 = inlined_call_operand.hbm [shape: bf16[128,512], index: 1, kind: input, shape index: {}]
  %s2 = inlined_call_operand.hbm [shape: bf16[512,128], index: 2, kind: input, shape index: {}]
  %s3 = inlined_call_operand.hbm [shape: bf16[128,128], index: 3, kind: input, shape index: {}]
  %s4 = inlined_call_operand.hbm [shape: bf16[128,128], index: 4, kind: input, shape index: {}]
  %s5 = inlined_call_operand.hbm [shape: bf16[128,128], index: 5, kind: input, shape index: {}]
  %s6 = inlined_call_operand.hbm [shape: bf16[128,128], index: 6, kind: input, shape index: {}]
  %s7 = inlined_call_operand.hbm [shape: bf16[128,512], index: 7, kind: input, shape index: {}]
  %s8 = inlined_call_operand.hbm [shape: bf16[512,128], index: 8, kind: input, shape index: {}]
  %s9 = inlined_call_operand.vmem [shape: f32[8,512], index: 9, kind: input, shape index: {}]
  %s10 = inlined_call_operand.hbm [shape: f32[8,128], index: 10, kind: output, shape index: {}]
  %s11 = sld [smem:[#allocation0]]
  $region86: #{tpu_custom_call.1} parent=0
    _
  %s13 = ssub.s32 1, %s11
  %s14 = scalar_select 0, %s13, %s11
  $region1: #{tpu_custom_call.1} parent=0
    #allocation2 [shape = 'u8[2048]{0}', space=vmem, size = 0x800, scoped, tag = 'input window, operand 0, single buffered']
    #allocation3 [shape = 's32[1]{0}', space=sflag, size = 0x4, scoped, tag = 'scoped memory for tpu_custom_call.1']
    #allocation4 [shape = 's32[1]{0}', space=sflag, size = 0x4, scoped, tag = 'scoped memory for tpu_custom_call.1']
    #allocation5 [shape = 'u8[131072]{0}', space=vmem, size = 0x20000, scoped, tag = 'input window, operand 1, single buffered']
    #allocation6 [shape = 's32[1]{0}', space=sflag, size = 0x4, scoped, tag = 'scoped memory for tpu_custom_call.1']
    #allocation7 [shape = 'u8[131072]{0}', space=vmem, size = 0x20000, scoped, tag = 'input window, operand 2, single buffered']
    #allocation8 [shape = 'u8[32768]{0}', space=vmem, size = 0x8000, scoped, tag = 'input window, operand 3, single buffered']
    #allocation9 [shape = 's32[1]{0}', space=sflag, size = 0x4, scoped, tag = 'scoped memory for tpu_custom_call.1']
    #allocation10 [shape = 'u8[32768]{0}', space=vmem, size = 0x8000, scoped, tag = 'input window, operand 4, single buffered']
    #allocation11 [shape = 'u8[32768]{0}', space=vmem, size = 0x8000, scoped, tag = 'input window, operand 5, single buffered']
    #allocation12 [shape = 's32[1]{0}', space=sflag, size = 0x4, scoped, tag = 'scoped memory for tpu_custom_call.1']
    #allocation13 [shape = 'u8[32768]{0}', space=vmem, size = 0x8000, scoped, tag = 'input window, operand 6, single buffered']
    #allocation14 [shape = 'u8[131072]{0}', space=vmem, size = 0x20000, scoped, tag = 'input window, operand 7, single buffered']
    #allocation15 [shape = 's32[1]{0}', space=sflag, size = 0x4, scoped, tag = 'scoped memory for tpu_custom_call.1']
    #allocation16 [shape = 'u8[131072]{0}', space=vmem, size = 0x20000, scoped, tag = 'input window, operand 8, single buffered']
    #allocation17 [shape = 'u8[4096]{0}', space=vmem, size = 0x1000, scoped, tag = 'output window, operand 0, single buffered']
    %15 = vsyncpa [#allocation3], 0
    %16 = vsyncpa [#allocation6], 0
    %17 = vsyncpa [#allocation9], 0
    %18 = vsyncpa [#allocation12], 0
    %19 = vsyncpa [#allocation15], 0
    %20 = vsyncpa [#allocation4], 0
    // Predicated region
    $region2: #{tpu_custom_call.1} parent=1 // pred_check
      _
    $region3: #{tpu_custom_call.1} parent=1 // pred_check_branch
      %22 = sbr.rel (0) target = $region5
    $region4: #{tpu_custom_call.1} parent=1 // pred_region
      %s24 = ssub.s32 64, 64
      %25 = vsyncadd [#allocation3], %s24
      %s27 = sshll.u32 [#allocation2], 4
      %s28 = int_to_ptr.vmem [resolvable:$true] %s27
      %30 = dma.hbm_to_vmem [thread:$0]  %s0, 64, %s28, [#allocation3]
    $region5: #{tpu_custom_call.1} parent=1 // pred_fallthru
      _
    // Predicated region
    $region6: #{tpu_custom_call.1} parent=1 // pred_check
      _
    $region7: #{tpu_custom_call.1} parent=1 // pred_check_branch
      %32 = sbr.rel (0) target = $region9
    $region8: #{tpu_custom_call.1} parent=1 // pred_region
      %s34 = ssub.s32 4096, 4096
      %35 = vsyncadd [#allocation6], %s34
      %s36 = sshll.u32 [#allocation5], 4
      %s37 = int_to_ptr.vmem [resolvable:$true] %s36
      %42 = dma.hbm_to_vmem [thread:$0]  %s1, 4096, %s37, [#allocation6], 256, 256, 16
    $region9: #{tpu_custom_call.1} parent=1 // pred_fallthru
      _
    // Predicated region
    $region10: #{tpu_custom_call.1} parent=1 // pred_check
      _
    $region11: #{tpu_custom_call.1} parent=1 // pred_check_branch
      %44 = sbr.rel (0) target = $region13
    $region12: #{tpu_custom_call.1} parent=1 // pred_region
      %s46 = ssub.s32 4096, 4096
      %47 = vsyncadd [#allocation6], %s46
      %s48 = sshll.u32 [#allocation7], 4
      %s49 = int_to_ptr.vmem [resolvable:$true] %s48
      %54 = dma.hbm_to_vmem [thread:$0]  %s2, 4096, %s49, [#allocation6], 64, 64, 4
    $region13: #{tpu_custom_call.1} parent=1 // pred_fallthru
      _
    // Predicated region
    $region14: #{tpu_custom_call.1} parent=1 // pred_check
      _
    $region15: #{tpu_custom_call.1} parent=1 // pred_check_branch
      %56 = sbr.rel (0) target = $region17
    $region16: #{tpu_custom_call.1} parent=1 // pred_region
      %s58 = ssub.s32 1024, 1024
      %59 = vsyncadd [#allocation9], %s58
      %s60 = sshll.u32 [#allocation8], 4
      %s61 = int_to_ptr.vmem [resolvable:$true] %s60
      %66 = dma.hbm_to_vmem [thread:$0]  %s3, 1024, %s61, [#allocation9], 64, 64, 4
    $region17: #{tpu_custom_call.1} parent=1 // pred_fallthru
      _
    // Predicated region
    $region18: #{tpu_custom_call.1} parent=1 // pred_check
      _
    $region19: #{tpu_custom_call.1} parent=1 // pred_check_branch
      %68 = sbr.rel (0) target = $region21
    $region20: #{tpu_custom_call.1} parent=1 // pred_region
      %s70 = ssub.s32 1024, 1024
      %71 = vsyncadd [#allocation9], %s70
      %s72 = sshll.u32 [#allocation10], 4
      %s73 = int_to_ptr.vmem [resolvable:$true] %s72
      %78 = dma.hbm_to_vmem [thread:$0]  %s4, 1024, %s73, [#allocation9], 64, 64, 4
    $region21: #{tpu_custom_call.1} parent=1 // pred_fallthru
      _
    // Predicated region
    $region22: #{tpu_custom_call.1} parent=1 // pred_check
      _
    $region23: #{tpu_custom_call.1} parent=1 // pred_check_branch
      %80 = sbr.rel (0) target = $region25
    $region24: #{tpu_custom_call.1} parent=1 // pred_region
      %s82 = ssub.s32 1024, 1024
      %83 = vsyncadd [#allocation12], %s82
      %s84 = sshll.u32 [#allocation11], 4
      %s85 = int_to_ptr.vmem [resolvable:$true] %s84
      %90 = dma.hbm_to_vmem [thread:$0]  %s5, 1024, %s85, [#allocation12], 64, 64, 4
    $region25: #{tpu_custom_call.1} parent=1 // pred_fallthru
      _
    // Predicated region
    $region26: #{tpu_custom_call.1} parent=1 // pred_check
      _
    $region27: #{tpu_custom_call.1} parent=1 // pred_check_branch
      %92 = sbr.rel (0) target = $region29
    $region28: #{tpu_custom_call.1} parent=1 // pred_region
      %s94 = ssub.s32 1024, 1024
      %95 = vsyncadd [#allocation12], %s94
      %s96 = sshll.u32 [#allocation13], 4
      %s97 = int_to_ptr.vmem [resolvable:$true] %s96
      %102 = dma.hbm_to_vmem [thread:$0]  %s6, 1024, %s97, [#allocation12], 64, 64, 4
    $region29: #{tpu_custom_call.1} parent=1 // pred_fallthru
      _
    // Predicated region
    $region30: #{tpu_custom_call.1} parent=1 // pred_check
      _
    $region31: #{tpu_custom_call.1} parent=1 // pred_check_branch
      %104 = sbr.rel (0) target = $region33
    $region32: #{tpu_custom_call.1} parent=1 // pred_region
      %s106 = ssub.s32 4096, 4096
      %107 = vsyncadd [#allocation15], %s106
      %s108 = sshll.u32 [#allocation14], 4
      %s109 = int_to_ptr.vmem [resolvable:$true] %s108
      %114 = dma.hbm_to_vmem [thread:$0]  %s7, 4096, %s109, [#allocation15], 256, 256, 16
    $region33: #{tpu_custom_call.1} parent=1 // pred_fallthru
      _
    // Predicated region
    $region34: #{tpu_custom_call.1} parent=1 // pred_check
      _
    $region35: #{tpu_custom_call.1} parent=1 // pred_check_branch
      %116 = sbr.rel (0) target = $region37
    $region36: #{tpu_custom_call.1} parent=1 // pred_region
      %s118 = ssub.s32 4096, 4096
      %119 = vsyncadd [#allocation15], %s118
      %s120 = sshll.u32 [#allocation16], 4
      %s121 = int_to_ptr.vmem [resolvable:$true] %s120
      %126 = dma.hbm_to_vmem [thread:$0]  %s8, 4096, %s121, [#allocation15], 64, 64, 4
    $region37: #{tpu_custom_call.1} parent=1 // pred_fallthru
      _
    // Predicated region
    $region38: #{tpu_custom_call.1} parent=1 // pred_check
      _
    $region39: #{tpu_custom_call.1} parent=1 // pred_check_branch
      %128 = sbr.rel (0) target = $region41
    $region40: #{tpu_custom_call.1} parent=1 // pred_region
      _
    $region41: #{tpu_custom_call.1} parent=1 // pred_fallthru
      _
    // Predicated region
    $region42: #{tpu_custom_call.1} parent=1 // pred_check
      _
    $region43: #{tpu_custom_call.1} parent=1 // pred_check_branch
      %130 = sbr.rel (0) target = $region45
    $region44: #{tpu_custom_call.1} parent=1 // pred_region
      %131 = dma.done [#allocation3], 64
    $region45: #{tpu_custom_call.1} parent=1 // pred_fallthru
      _
    // Predicated region
    $region46: #{tpu_custom_call.1} parent=1 // pred_check
      _
    $region47: #{tpu_custom_call.1} parent=1 // pred_check_branch
      %133 = sbr.rel (0) target = $region49
    $region48: #{tpu_custom_call.1} parent=1 // pred_region
      %134 = dma.done [#allocation6], 4096
    $region49: #{tpu_custom_call.1} parent=1 // pred_fallthru
      _
    // Predicated region
    $region50: #{tpu_custom_call.1} parent=1 // pred_check
      _
    $region51: #{tpu_custom_call.1} parent=1 // pred_check_branch
      %136 = sbr.rel (0) target = $region53
    $region52: #{tpu_custom_call.1} parent=1 // pred_region
      %137 = dma.done [#allocation6], 4096
    $region53: #{tpu_custom_call.1} parent=1 // pred_fallthru
      _
    // Predicated region
    $region54: #{tpu_custom_call.1} parent=1 // pred_check
      _
    $region55: #{tpu_custom_call.1} parent=1 // pred_check_branch
      %139 = sbr.rel (0) target = $region57
    $region56: #{tpu_custom_call.1} parent=1 // pred_region
      %140 = dma.done [#allocation9], 1024
    $region57: #{tpu_custom_call.1} parent=1 // pred_fallthru
      _
    // Predicated region
    $region58: #{tpu_custom_call.1} parent=1 // pred_check
      _
    $region59: #{tpu_custom_call.1} parent=1 // pred_check_branch
      %142 = sbr.rel (0) target = $region61
    $region60: #{tpu_custom_call.1} parent=1 // pred_region
      %143 = dma.done [#allocation9], 1024
    $region61: #{tpu_custom_call.1} parent=1 // pred_fallthru
      _
    // Predicated region
    $region62: #{tpu_custom_call.1} parent=1 // pred_check
      _
    $region63: #{tpu_custom_call.1} parent=1 // pred_check_branch
      %145 = sbr.rel (0) target = $region65
    $region64: #{tpu_custom_call.1} parent=1 // pred_region
      %146 = dma.done [#allocation12], 1024
    $region65: #{tpu_custom_call.1} parent=1 // pred_fallthru
      _
    // Predicated region
    $region66: #{tpu_custom_call.1} parent=1 // pred_check
      _
    $region67: #{tpu_custom_call.1} parent=1 // pred_check_branch
      %148 = sbr.rel (0) target = $region69
    $region68: #{tpu_custom_call.1} parent=1 // pred_region
      %149 = dma.done [#allocation12], 1024
    $region69: #{tpu_custom_call.1} parent=1 // pred_fallthru
      _
    // Predicated region
    $region70: #{tpu_custom_call.1} parent=1 // pred_check
      _
    $region71: #{tpu_custom_call.1} parent=1 // pred_check_branch
      %151 = sbr.rel (0) target = $region73
    $region72: #{tpu_custom_call.1} parent=1 // pred_region
      %152 = dma.done [#allocation15], 4096
    $region73: #{tpu_custom_call.1} parent=1 // pred_fallthru
      _
    // Predicated region
    $region74: #{tpu_custom_call.1} parent=1 // pred_check
      _
    $region75: #{tpu_custom_call.1} parent=1 // pred_check_branch
      %154 = sbr.rel (0) target = $region77
    $region76: #{tpu_custom_call.1} parent=1 // pred_region
      %155 = dma.done [#allocation15], 4096
    $region77: #{tpu_custom_call.1} parent=1 // pred_fallthru
      _
    %v157 = vld [vmem:[#allocation2] sm:$0xf]
    %v158 = vld [vmem:[#allocation5] sm:$0xff]
    %v159 = vld [vmem:[#allocation5 + $0x8] sm:$0xff]
    %v160 = vld [vmem:[#allocation5 + $0x10] sm:$0xff]
    %v161 = vld [vmem:[#allocation5 + $0x18] sm:$0xff]
    %v162 = vld [vmem:[#allocation5 + $0x20] sm:$0xff]
    %v163 = vld [vmem:[#allocation5 + $0x28] sm:$0xff]
    %v164 = vld [vmem:[#allocation5 + $0x30] sm:$0xff]
    %v165 = vld [vmem:[#allocation5 + $0x38] sm:$0xff]
    %v166 = vld [vmem:[#allocation5 + $0x40] sm:$0xff]
    %v167 = vld [vmem:[#allocation5 + $0x48] sm:$0xff]
    %v168 = vld [vmem:[#allocation5 + $0x50] sm:$0xff]
    %v169 = vld [vmem:[#allocation5 + $0x58] sm:$0xff]
    %v170 = vld [vmem:[#allocation5 + $0x60] sm:$0xff]
    %v171 = vld [vmem:[#allocation5 + $0x68] sm:$0xff]
    %v172 = vld [vmem:[#allocation5 + $0x70] sm:$0xff]
    %v173 = vld [vmem:[#allocation5 + $0x78] sm:$0xff]
    %v174 = vld [vmem:[#allocation5 + $0x80] sm:$0xff]
    %v175 = vld [vmem:[#allocation5 + $0x88] sm:$0xff]
    %v176 = vld [vmem:[#allocation5 + $0x90] sm:$0xff]
    %v177 = vld [vmem:[#allocation5 + $0x98] sm:$0xff]
    %v178 = vld [vmem:[#allocation5 + $0xa0] sm:$0xff]
    %v179 = vld [vmem:[#allocation5 + $0xa8] sm:$0xff]
    %v180 = vld [vmem:[#allocation5 + $0xb0] sm:$0xff]
    %v181 = vld [vmem:[#allocation5 + $0xb8] sm:$0xff]
    %v182 = vld [vmem:[#allocation5 + $0xc0] sm:$0xff]
    %v183 = vld [vmem:[#allocation5 + $0xc8] sm:$0xff]
    %v184 = vld [vmem:[#allocation5 + $0xd0] sm:$0xff]
    %v185 = vld [vmem:[#allocation5 + $0xd8] sm:$0xff]
    %v186 = vld [vmem:[#allocation5 + $0xe0] sm:$0xff]
    %v187 = vld [vmem:[#allocation5 + $0xe8] sm:$0xff]
    %v188 = vld [vmem:[#allocation5 + $0xf0] sm:$0xff]
    %v189 = vld [vmem:[#allocation5 + $0xf8] sm:$0xff]
    %v190 = vld [vmem:[%s9] ss:$8 sm:$0xf]
    %v192 = vlaneseq
    %v193 = vshrl.u32 %v192, 7
    %v194 = vsub.s32 0, %v193
    %v195 = vrot.slane %v190, %v194
    %v196 = vlaneseq
    %v197 = vshrl.u32 %v196, 7
    %v198 = vsub.s32 1, %v197
    %v199 = vrot.slane %v190, %v198
    %v200 = vlaneseq
    %v201 = vshrl.u32 %v200, 7
    %v202 = vsub.s32 2, %v201
    %v203 = vrot.slane %v190, %v202
    %v204 = vlaneseq
    %v205 = vshrl.u32 %v204, 7
    %v206 = vsub.s32 3, %v205
    %v207 = vrot.slane %v190, %v206
    %v244 = vunpack.c.l.b16 %v158
    %v245 = vunpack.c.h.b16 %v158
    %v246 = vunpack.c.l.b16 %v159
    %v247 = vunpack.c.h.b16 %v159
    %v248 = vunpack.c.l.b16 %v160
    %v249 = vunpack.c.h.b16 %v160
    %v250 = vunpack.c.l.b16 %v161
    %v251 = vunpack.c.h.b16 %v161
    %v252 = vunpack.c.l.b16 %v162
    %v253 = vunpack.c.h.b16 %v162
    %v254 = vunpack.c.l.b16 %v163
    %v255 = vunpack.c.h.b16 %v163
    %v256 = vunpack.c.l.b16 %v164
    %v257 = vunpack.c.h.b16 %v164
    %v258 = vunpack.c.l.b16 %v165
    %v259 = vunpack.c.h.b16 %v165
    %v260 = vunpack.c.l.b16 %v166
    %v261 = vunpack.c.h.b16 %v166
    %v262 = vunpack.c.l.b16 %v167
    %v263 = vunpack.c.h.b16 %v167
    %v264 = vunpack.c.l.b16 %v168
    %v265 = vunpack.c.h.b16 %v168
    %v266 = vunpack.c.l.b16 %v169
    %v267 = vunpack.c.h.b16 %v169
    %v268 = vunpack.c.l.b16 %v170
    %v269 = vunpack.c.h.b16 %v170
    %v270 = vunpack.c.l.b16 %v171
    %v271 = vunpack.c.h.b16 %v171
    %v272 = vunpack.c.l.b16 %v172
    %v273 = vunpack.c.h.b16 %v172
    %v274 = vunpack.c.l.b16 %v173
    %v275 = vunpack.c.h.b16 %v173
    %v276 = vunpack.c.l.b16 %v174
    %v277 = vunpack.c.h.b16 %v174
    %v278 = vunpack.c.l.b16 %v175
    %v279 = vunpack.c.h.b16 %v175
    %v280 = vunpack.c.l.b16 %v176
    %v281 = vunpack.c.h.b16 %v176
    %v282 = vunpack.c.l.b16 %v177
    %v283 = vunpack.c.h.b16 %v177
    %v284 = vunpack.c.l.b16 %v178
    %v285 = vunpack.c.h.b16 %v178
    %v286 = vunpack.c.l.b16 %v179
    %v287 = vunpack.c.h.b16 %v179
    %v288 = vunpack.c.l.b16 %v180
    %v289 = vunpack.c.h.b16 %v180
    %v290 = vunpack.c.l.b16 %v181
    %v291 = vunpack.c.h.b16 %v181
    %v292 = vunpack.c.l.b16 %v182
    %v293 = vunpack.c.h.b16 %v182
    %v294 = vunpack.c.l.b16 %v183
    %v295 = vunpack.c.h.b16 %v183
    %v296 = vunpack.c.l.b16 %v184
    %v297 = vunpack.c.h.b16 %v184
    %v298 = vunpack.c.l.b16 %v185
    %v299 = vunpack.c.h.b16 %v185
    %v300 = vunpack.c.l.b16 %v186
    %v301 = vunpack.c.h.b16 %v186
    %v302 = vunpack.c.l.b16 %v187
    %v303 = vunpack.c.h.b16 %v187
    %v304 = vunpack.c.l.b16 %v188
    %v305 = vunpack.c.h.b16 %v188
    %v306 = vunpack.c.l.b16 %v189
    %v307 = vunpack.c.h.b16 %v189
    %v308 = vpack.c.b16 %v248, %v244
    %v309 = vpack.c.b16 %v249, %v245
    %v310 = vpack.c.b16 %v250, %v246
    %v311 = vpack.c.b16 %v251, %v247
    %v312 = vpack.c.b16 %v256, %v252
    %v313 = vpack.c.b16 %v257, %v253
    %v314 = vpack.c.b16 %v258, %v254
    %v315 = vpack.c.b16 %v259, %v255
    %v316 = vpack.c.b16 %v264, %v260
    %v317 = vpack.c.b16 %v265, %v261
    %v318 = vpack.c.b16 %v266, %v262
    %v319 = vpack.c.b16 %v267, %v263
    %v320 = vpack.c.b16 %v272, %v268
    %v321 = vpack.c.b16 %v273, %v269
    %v322 = vpack.c.b16 %v274, %v270
    %v323 = vpack.c.b16 %v275, %v271
    %v324 = vpack.c.b16 %v280, %v276
    %v325 = vpack.c.b16 %v281, %v277
    %v326 = vpack.c.b16 %v282, %v278
    %v327 = vpack.c.b16 %v283, %v279
    %v328 = vpack.c.b16 %v288, %v284
    %v329 = vpack.c.b16 %v289, %v285
    %v330 = vpack.c.b16 %v290, %v286
    %v331 = vpack.c.b16 %v291, %v287
    %v332 = vpack.c.b16 %v296, %v292
    %v333 = vpack.c.b16 %v297, %v293
    %v334 = vpack.c.b16 %v298, %v294
    %v335 = vpack.c.b16 %v299, %v295
    %v336 = vpack.c.b16 %v304, %v300
    %v337 = vpack.c.b16 %v305, %v301
    %v338 = vpack.c.b16 %v306, %v302
    %v339 = vpack.c.b16 %v307, %v303
    %372 = vmatprep.subr.bf16.mxu0 %v309
    %373 = vmatpush1.bf16.msra.mxu0 %v308
    %374 = vmatprep.subr.bf16.mxu0 %v313
    %375 = vmatpush1.bf16.msra.mxu0 %v312
    %376 = vmatprep.subr.bf16.mxu0 %v317
    %377 = vmatpush1.bf16.msra.mxu0 %v316
    %378 = vmatprep.subr.bf16.mxu0 %v321
    %379 = vmatpush1.bf16.msra.mxu0 %v320
    %380 = vmatprep.subr.bf16.mxu0 %v325
    %381 = vmatpush1.bf16.msra.mxu0 %v324
    %382 = vmatprep.subr.bf16.mxu0 %v329
    %383 = vmatpush1.bf16.msra.mxu0 %v328
    %384 = vmatprep.subr.bf16.mxu0 %v333
    %385 = vmatpush1.bf16.msra.mxu0 %v332
    %386 = vmatprep.subr.bf16.mxu0 %v337
    %387 = vmatpush1.bf16.msra.mxu0 %v336
    %388 = vmatprep.subr.bf16.mxu0 0
    %389 = vmatpush1.bf16.msra.mxu0 0
    %390 = vmatprep.subr.bf16.mxu0 0
    %391 = vmatpush1.bf16.msra.mxu0 0
    %392 = vmatprep.subr.bf16.mxu0 0
    %393 = vmatpush1.bf16.msra.mxu0 0
    %394 = vmatprep.subr.bf16.mxu0 0
    %395 = vmatpush1.bf16.msra.mxu0 0
    %396 = vmatprep.subr.bf16.mxu0 0
    %397 = vmatpush1.bf16.msra.mxu0 0
    %398 = vmatprep.subr.bf16.mxu0 0
    %399 = vmatpush1.bf16.msra.mxu0 0
    %400 = vmatprep.subr.bf16.mxu0 0
    %401 = vmatpush1.bf16.msra.mxu0 0
    %402 = vmatprep.subr.bf16.mxu0 0
    %403 = vmatpush1.bf16.msra.mxu0 0
    %404 = vmatprep.mubr.bf16.mxu0 0
    %405 = vmatmul.mubr.bf16.gmra.mrb[0].mxu0 %v157
    %v406 = vpop.f32.mrb[0].mxu0
    %v407 = vadd.f32 %v195, %v406
    %v408 = vpop.f32.mrb[0].mxu0
    %v409 = vadd.f32 %v199, %v408
    %v410 = vpop.f32.mrb[0].mxu0
    %v411 = vpop.f32.mrb[0].mxu0
    %412 = vdwg.mxu0
    %413 = vmatprep.subr.bf16.mxu0 %v311
    %414 = vmatpush1.bf16.msra.mxu0 %v310
    %415 = vmatprep.subr.bf16.mxu0 %v315
    %416 = vmatpush1.bf16.msra.mxu0 %v314
    %417 = vmatprep.subr.bf16.mxu0 %v319
    %418 = vmatpush1.bf16.msra.mxu0 %v318
    %419 = vmatprep.subr.bf16.mxu0 %v323
    %420 = vmatpush1.bf16.msra.mxu0 %v322
    %421 = vmatprep.subr.bf16.mxu0 %v327
    %422 = vmatpush1.bf16.msra.mxu0 %v326
    %423 = vmatprep.subr.bf16.mxu0 %v331
    %424 = vmatpush1.bf16.msra.mxu0 %v330
    %425 = vmatprep.subr.bf16.mxu0 %v335
    %426 = vmatpush1.bf16.msra.mxu0 %v334
    %427 = vmatprep.subr.bf16.mxu0 %v339
    %428 = vmatpush1.bf16.msra.mxu0 %v338
    %429 = vmatprep.subr.bf16.mxu0 0
    %430 = vmatpush1.bf16.msra.mxu0 0
    %431 = vmatprep.subr.bf16.mxu0 0
    %432 = vmatpush1.bf16.msra.mxu0 0
    %433 = vmatprep.subr.bf16.mxu0 0
    %434 = vmatpush1.bf16.msra.mxu0 0
    %435 = vmatprep.subr.bf16.mxu0 0
    %436 = vmatpush1.bf16.msra.mxu0 0
    %437 = vmatprep.subr.bf16.mxu0 0
    %438 = vmatpush1.bf16.msra.mxu0 0
    %439 = vmatprep.subr.bf16.mxu0 0
    %440 = vmatpush1.bf16.msra.mxu0 0
    %441 = vmatprep.subr.bf16.mxu0 0
    %442 = vmatpush1.bf16.msra.mxu0 0
    %443 = vmatprep.subr.bf16.mxu0 0
    %444 = vmatpush1.bf16.msra.mxu0 0
    %445 = vmatprep.mubr.bf16.mxu0 0
    %446 = vmatmul.mubr.bf16.gmra.mrb[0].mxu0 %v157
    %v447 = vpop.f32.mrb[0].mxu0
    %v448 = vadd.f32 %v203, %v447
    %v449 = vpop.f32.mrb[0].mxu0
    %v450 = vadd.f32 %v207, %v449
    %v451 = vpop.f32.mrb[0].mxu0
    %v452 = vpop.f32.mrb[0].mxu0
    %453 = vdwg.mxu0
    %v454 = vmax.f32 %v407, 0.0
    %v455 = vmax.f32 %v409, 0.0
    %v456 = vmax.f32 %v448, 0.0
    %v457 = vmax.f32 %v450, 0.0
    %v458 = vpack.c.bf16 %v454, %v454
    %v459 = vpack.c.bf16 %v455, %v455
    %v460 = vpack.c.bf16 %v456, %v456
    %v461 = vpack.c.bf16 %v457, %v457
    %v462 = vld [vmem:[#allocation7] sm:$0xf]
    %v463 = vld [vmem:[#allocation7 + $0x4] sm:$0xf]
    %v464 = vld [vmem:[#allocation7 + $0x8] sm:$0xf]
    %v465 = vld [vmem:[#allocation7 + $0xc] sm:$0xf]
    %v466 = vld [vmem:[#allocation7 + $0x10] sm:$0xf]
    %v467 = vld [vmem:[#allocation7 + $0x14] sm:$0xf]
    %v468 = vld [vmem:[#allocation7 + $0x18] sm:$0xf]
    %v469 = vld [vmem:[#allocation7 + $0x1c] sm:$0xf]
    %v470 = vld [vmem:[#allocation7 + $0x20] sm:$0xf]
    %v471 = vld [vmem:[#allocation7 + $0x24] sm:$0xf]
    %v472 = vld [vmem:[#allocation7 + $0x28] sm:$0xf]
    %v473 = vld [vmem:[#allocation7 + $0x2c] sm:$0xf]
    %v474 = vld [vmem:[#allocation7 + $0x30] sm:$0xf]
    %v475 = vld [vmem:[#allocation7 + $0x34] sm:$0xf]
    %v476 = vld [vmem:[#allocation7 + $0x38] sm:$0xf]
    %v477 = vld [vmem:[#allocation7 + $0x3c] sm:$0xf]
    %v478 = vld [vmem:[#allocation7 + $0x40] sm:$0xf]
    %v479 = vld [vmem:[#allocation7 + $0x44] sm:$0xf]
    %v480 = vld [vmem:[#allocation7 + $0x48] sm:$0xf]
    %v481 = vld [vmem:[#allocation7 + $0x4c] sm:$0xf]
    %v482 = vld [vmem:[#allocation7 + $0x50] sm:$0xf]
    %v483 = vld [vmem:[#allocation7 + $0x54] sm:$0xf]
    %v484 = vld [vmem:[#allocation7 + $0x58] sm:$0xf]
    %v485 = vld [vmem:[#allocation7 + $0x5c] sm:$0xf]
    %v486 = vld [vmem:[#allocation7 + $0x60] sm:$0xf]
    %v487 = vld [vmem:[#allocation7 + $0x64] sm:$0xf]
    %v488 = vld [vmem:[#allocation7 + $0x68] sm:$0xf]
    %v489 = vld [vmem:[#allocation7 + $0x6c] sm:$0xf]
    %v490 = vld [vmem:[#allocation7 + $0x70] sm:$0xf]
    %v491 = vld [vmem:[#allocation7 + $0x74] sm:$0xf]
    %v492 = vld [vmem:[#allocation7 + $0x78] sm:$0xf]
    %v493 = vld [vmem:[#allocation7 + $0x7c] sm:$0xf]
    %v494 = vld [vmem:[#allocation7 + $0x80] sm:$0xf]
    %v495 = vld [vmem:[#allocation7 + $0x84] sm:$0xf]
    %v496 = vld [vmem:[#allocation7 + $0x88] sm:$0xf]
    %v497 = vld [vmem:[#allocation7 + $0x8c] sm:$0xf]
    %v498 = vld [vmem:[#allocation7 + $0x90] sm:$0xf]
    %v499 = vld [vmem:[#allocation7 + $0x94] sm:$0xf]
    %v500 = vld [vmem:[#allocation7 + $0x98] sm:$0xf]
    %v501 = vld [vmem:[#allocation7 + $0x9c] sm:$0xf]
    %v502 = vld [vmem:[#allocation7 + $0xa0] sm:$0xf]
    %v503 = vld [vmem:[#allocation7 + $0xa4] sm:$0xf]
    %v504 = vld [vmem:[#allocation7 + $0xa8] sm:$0xf]
    %v505 = vld [vmem:[#allocation7 + $0xac] sm:$0xf]
    %v506 = vld [vmem:[#allocation7 + $0xb0] sm:$0xf]
    %v507 = vld [vmem:[#allocation7 + $0xb4] sm:$0xf]
    %v508 = vld [vmem:[#allocation7 + $0xb8] sm:$0xf]
    %v509 = vld [vmem:[#allocation7 + $0xbc] sm:$0xf]
    %v510 = vld [vmem:[#allocation7 + $0xc0] sm:$0xf]
    %v511 = vld [vmem:[#allocation7 + $0xc4] sm:$0xf]
    %v512 = vld [vmem:[#allocation7 + $0xc8] sm:$0xf]
    %v513 = vld [vmem:[#allocation7 + $0xcc] sm:$0xf]
    %v514 = vld [vmem:[#allocation7 + $0xd0] sm:$0xf]
    %v515 = vld [vmem:[#allocation7 + $0xd4] sm:$0xf]
    %v516 = vld [vmem:[#allocation7 + $0xd8] sm:$0xf]
    %v517 = vld [vmem:[#allocation7 + $0xdc] sm:$0xf]
    %v518 = vld [vmem:[#allocation7 + $0xe0] sm:$0xf]
    %v519 = vld [vmem:[#allocation7 + $0xe4] sm:$0xf]
    %v520 = vld [vmem:[#allocation7 + $0xe8] sm:$0xf]
    %v521 = vld [vmem:[#allocation7 + $0xec] sm:$0xf]
    %v522 = vld [vmem:[#allocation7 + $0xf0] sm:$0xf]
    %v523 = vld [vmem:[#allocation7 + $0xf4] sm:$0xf]
    %v524 = vld [vmem:[#allocation7 + $0xf8] sm:$0xf]
    %v525 = vld [vmem:[#allocation7 + $0xfc] sm:$0xf]
    %v526 = vld [vmem:[%s9 + $0x1] ss:$0 sm:$0xff]
    %v591 = vunpack.c.l.b16 %v462
    %v592 = vunpack.c.l.b16 %v463
    %v593 = vunpack.c.l.b16 %v464
    %v594 = vunpack.c.l.b16 %v465
    %v595 = vunpack.c.l.b16 %v466
    %v596 = vunpack.c.l.b16 %v467
    %v597 = vunpack.c.l.b16 %v468
    %v598 = vunpack.c.l.b16 %v469
    %v599 = vunpack.c.l.b16 %v470
    %v600 = vunpack.c.l.b16 %v471
    %v601 = vunpack.c.l.b16 %v472
    %v602 = vunpack.c.l.b16 %v473
    %v603 = vunpack.c.l.b16 %v474
    %v604 = vunpack.c.l.b16 %v475
    %v605 = vunpack.c.l.b16 %v476
    %v606 = vunpack.c.l.b16 %v477
    %v607 = vunpack.c.l.b16 %v478
    %v608 = vunpack.c.l.b16 %v479
    %v609 = vunpack.c.l.b16 %v480
    %v610 = vunpack.c.l.b16 %v481
    %v611 = vunpack.c.l.b16 %v482
    %v612 = vunpack.c.l.b16 %v483
    %v613 = vunpack.c.l.b16 %v484
    %v614 = vunpack.c.l.b16 %v485
    %v615 = vunpack.c.l.b16 %v486
    %v616 = vunpack.c.l.b16 %v487
    %v617 = vunpack.c.l.b16 %v488
    %v618 = vunpack.c.l.b16 %v489
    %v619 = vunpack.c.l.b16 %v490
    %v620 = vunpack.c.l.b16 %v491
    %v621 = vunpack.c.l.b16 %v492
    %v622 = vunpack.c.l.b16 %v493
    %v623 = vunpack.c.l.b16 %v494
    %v624 = vunpack.c.l.b16 %v495
    %v625 = vunpack.c.l.b16 %v496
    %v626 = vunpack.c.l.b16 %v497
    %v627 = vunpack.c.l.b16 %v498
    %v628 = vunpack.c.l.b16 %v499
    %v629 = vunpack.c.l.b16 %v500
    %v630 = vunpack.c.l.b16 %v501
    %v631 = vunpack.c.l.b16 %v502
    %v632 = vunpack.c.l.b16 %v503
    %v633 = vunpack.c.l.b16 %v504
    %v634 = vunpack.c.l.b16 %v505
    %v635 = vunpack.c.l.b16 %v506
    %v636 = vunpack.c.l.b16 %v507
    %v637 = vunpack.c.l.b16 %v508
    %v638 = vunpack.c.l.b16 %v509
    %v639 = vunpack.c.l.b16 %v510
    %v640 = vunpack.c.l.b16 %v511
    %v641 = vunpack.c.l.b16 %v512
    %v642 = vunpack.c.l.b16 %v513
    %v643 = vunpack.c.l.b16 %v514
    %v644 = vunpack.c.l.b16 %v515
    %v645 = vunpack.c.l.b16 %v516
    %v646 = vunpack.c.l.b16 %v517
    %v647 = vunpack.c.l.b16 %v518
    %v648 = vunpack.c.l.b16 %v519
    %v649 = vunpack.c.l.b16 %v520
    %v650 = vunpack.c.l.b16 %v521
    %v651 = vunpack.c.l.b16 %v522
    %v652 = vunpack.c.l.b16 %v523
    %v653 = vunpack.c.l.b16 %v524
    %v654 = vunpack.c.l.b16 %v525
    %v655 = vpack.c.b16 %v592, %v591
    %v656 = vpack.c.b16 %v594, %v593
    %v657 = vpack.c.b16 %v596, %v595
    %v658 = vpack.c.b16 %v598, %v597
    %v659 = vpack.c.b16 %v600, %v599
    %v660 = vpack.c.b16 %v602, %v601
    %v661 = vpack.c.b16 %v604, %v603
    %v662 = vpack.c.b16 %v606, %v605
    %v663 = vpack.c.b16 %v608, %v607
    %v664 = vpack.c.b16 %v610, %v609
    %v665 = vpack.c.b16 %v612, %v611
    %v666 = vpack.c.b16 %v614, %v613
    %v667 = vpack.c.b16 %v616, %v615
    %v668 = vpack.c.b16 %v618, %v617
    %v669 = vpack.c.b16 %v620, %v619
    %v670 = vpack.c.b16 %v622, %v621
    %v671 = vpack.c.b16 %v624, %v623
    %v672 = vpack.c.b16 %v626, %v625
    %v673 = vpack.c.b16 %v628, %v627
    %v674 = vpack.c.b16 %v630, %v629
    %v675 = vpack.c.b16 %v632, %v631
    %v676 = vpack.c.b16 %v634, %v633
    %v677 = vpack.c.b16 %v636, %v635
    %v678 = vpack.c.b16 %v638, %v637
    %v679 = vpack.c.b16 %v640, %v639
    %v680 = vpack.c.b16 %v642, %v641
    %v681 = vpack.c.b16 %v644, %v643
    %v682 = vpack.c.b16 %v646, %v645
    %v683 = vpack.c.b16 %v648, %v647
    %v684 = vpack.c.b16 %v650, %v649
    %v685 = vpack.c.b16 %v652, %v651
    %v686 = vpack.c.b16 %v654, %v653
    %719 = vmatprep.subr.bf16.mxu0 0
    %720 = vmatpush1.bf16.msra.mxu0 %v655
    %721 = vmatprep.subr.bf16.mxu0 0
    %722 = vmatpush1.bf16.msra.mxu0 %v656
    %723 = vmatprep.subr.bf16.mxu0 0
    %724 = vmatpush1.bf16.msra.mxu0 %v657
    %725 = vmatprep.subr.bf16.mxu0 0
    %726 = vmatpush1.bf16.msra.mxu0 %v658
    %727 = vmatprep.subr.bf16.mxu0 0
    %728 = vmatpush1.bf16.msra.mxu0 %v659
    %729 = vmatprep.subr.bf16.mxu0 0
    %730 = vmatpush1.bf16.msra.mxu0 %v660
    %731 = vmatprep.subr.bf16.mxu0 0
    %732 = vmatpush1.bf16.msra.mxu0 %v661
    %733 = vmatprep.subr.bf16.mxu0 0
    %734 = vmatpush1.bf16.msra.mxu0 %v662
    %735 = vmatprep.subr.bf16.mxu0 0
    %736 = vmatpush1.bf16.msra.mxu0 %v663
    %737 = vmatprep.subr.bf16.mxu0 0
    %738 = vmatpush1.bf16.msra.mxu0 %v664
    %739 = vmatprep.subr.bf16.mxu0 0
    %740 = vmatpush1.bf16.msra.mxu0 %v665
    %741 = vmatprep.subr.bf16.mxu0 0
    %742 = vmatpush1.bf16.msra.mxu0 %v666
    %743 = vmatprep.subr.bf16.mxu0 0
    %744 = vmatpush1.bf16.msra.mxu0 %v667
    %745 = vmatprep.subr.bf16.mxu0 0
    %746 = vmatpush1.bf16.msra.mxu0 %v668
    %747 = vmatprep.subr.bf16.mxu0 0
    %748 = vmatpush1.bf16.msra.mxu0 %v669
    %749 = vmatprep.subr.bf16.mxu0 0
    %750 = vmatpush1.bf16.msra.mxu0 %v670
    %751 = vmatprep.mubr.bf16.mxu0 %v459
    %752 = vmatmul.mubr.bf16.gmra.mrb[0].mxu0 %v458
    %v753 = vpop.f32.mrb[0].mxu0
    %v754 = vadd.f32 %v526, %v753
    %v755 = vpop.f32.mrb[0].mxu0
    %v756 = vpop.f32.mrb[0].mxu0
    %v757 = vpop.f32.mrb[0].mxu0
    %758 = vdwg.mxu0
    %759 = vmatprep.subr.bf16.mxu0 0
    %760 = vmatpush1.bf16.msra.mxu0 %v671
    %761 = vmatprep.subr.bf16.mxu0 0
    %762 = vmatpush1.bf16.msra.mxu0 %v672
    %763 = vmatprep.subr.bf16.mxu0 0
    %764 = vmatpush1.bf16.msra.mxu0 %v673
    %765 = vmatprep.subr.bf16.mxu0 0
    %766 = vmatpush1.bf16.msra.mxu0 %v674
    %767 = vmatprep.subr.bf16.mxu0 0
    %768 = vmatpush1.bf16.msra.mxu0 %v675
    %769 = vmatprep.subr.bf16.mxu0 0
    %770 = vmatpush1.bf16.msra.mxu0 %v676
    %771 = vmatprep.subr.bf16.mxu0 0
    %772 = vmatpush1.bf16.msra.mxu0 %v677
    %773 = vmatprep.subr.bf16.mxu0 0
    %774 = vmatpush1.bf16.msra.mxu0 %v678
    %775 = vmatprep.subr.bf16.mxu0 0
    %776 = vmatpush1.bf16.msra.mxu0 %v679
    %777 = vmatprep.subr.bf16.mxu0 0
    %778 = vmatpush1.bf16.msra.mxu0 %v680
    %779 = vmatprep.subr.bf16.mxu0 0
    %780 = vmatpush1.bf16.msra.mxu0 %v681
    %781 = vmatprep.subr.bf16.mxu0 0
    %782 = vmatpush1.bf16.msra.mxu0 %v682
    %783 = vmatprep.subr.bf16.mxu0 0
    %784 = vmatpush1.bf16.msra.mxu0 %v683
    %785 = vmatprep.subr.bf16.mxu0 0
    %786 = vmatpush1.bf16.msra.mxu0 %v684
    %787 = vmatprep.subr.bf16.mxu0 0
    %788 = vmatpush1.bf16.msra.mxu0 %v685
    %789 = vmatprep.subr.bf16.mxu0 0
    %790 = vmatpush1.bf16.msra.mxu0 %v686
    %791 = vmatprep.mubr.bf16.mxu0 %v461
    %792 = vmatmul.mubr.bf16.gmra.mrb[0].mxu0 %v460
    %v793 = vpop.f32.mrb[0].mxu0
    %v794 = vadd.f32 %v754, %v793
    %v795 = vpop.f32.mrb[0].mxu0
    %v796 = vpop.f32.mrb[0].mxu0
    %v797 = vpop.f32.mrb[0].mxu0
    %798 = vdwg.mxu0
    %v799 = vmax.f32 %v794, 0.0
    %v800 = vpack.c.bf16 %v799, %v799
    %v801 = vld [vmem:[#allocation8] sm:$0xf]
    %v802 = vld [vmem:[#allocation8 + $0x4] sm:$0xf]
    %v803 = vld [vmem:[#allocation8 + $0x8] sm:$0xf]
    %v804 = vld [vmem:[#allocation8 + $0xc] sm:$0xf]
    %v805 = vld [vmem:[#allocation8 + $0x10] sm:$0xf]
    %v806 = vld [vmem:[#allocation8 + $0x14] sm:$0xf]
    %v807 = vld [vmem:[#allocation8 + $0x18] sm:$0xf]
    %v808 = vld [vmem:[#allocation8 + $0x1c] sm:$0xf]
    %v809 = vld [vmem:[#allocation8 + $0x20] sm:$0xf]
    %v810 = vld [vmem:[#allocation8 + $0x24] sm:$0xf]
    %v811 = vld [vmem:[#allocation8 + $0x28] sm:$0xf]
    %v812 = vld [vmem:[#allocation8 + $0x2c] sm:$0xf]
    %v813 = vld [vmem:[#allocation8 + $0x30] sm:$0xf]
    %v814 = vld [vmem:[#allocation8 + $0x34] sm:$0xf]
    %v815 = vld [vmem:[#allocation8 + $0x38] sm:$0xf]
    %v816 = vld [vmem:[#allocation8 + $0x3c] sm:$0xf]
    %v817 = vld [vmem:[%s9 + $0x2] ss:$0 sm:$0xff]
    %v834 = vunpack.c.l.b16 %v801
    %v835 = vunpack.c.l.b16 %v802
    %v836 = vunpack.c.l.b16 %v803
    %v837 = vunpack.c.l.b16 %v804
    %v838 = vunpack.c.l.b16 %v805
    %v839 = vunpack.c.l.b16 %v806
    %v840 = vunpack.c.l.b16 %v807
    %v841 = vunpack.c.l.b16 %v808
    %v842 = vunpack.c.l.b16 %v809
    %v843 = vunpack.c.l.b16 %v810
    %v844 = vunpack.c.l.b16 %v811
    %v845 = vunpack.c.l.b16 %v812
    %v846 = vunpack.c.l.b16 %v813
    %v847 = vunpack.c.l.b16 %v814
    %v848 = vunpack.c.l.b16 %v815
    %v849 = vunpack.c.l.b16 %v816
    %v850 = vpack.c.b16 %v835, %v834
    %v851 = vpack.c.b16 %v837, %v836
    %v852 = vpack.c.b16 %v839, %v838
    %v853 = vpack.c.b16 %v841, %v840
    %v854 = vpack.c.b16 %v843, %v842
    %v855 = vpack.c.b16 %v845, %v844
    %v856 = vpack.c.b16 %v847, %v846
    %v857 = vpack.c.b16 %v849, %v848
    %866 = vmatprep.subr.bf16.mxu0 0
    %867 = vmatpush1.bf16.msra.mxu0 %v850
    %868 = vmatprep.subr.bf16.mxu0 0
    %869 = vmatpush1.bf16.msra.mxu0 %v851
    %870 = vmatprep.subr.bf16.mxu0 0
    %871 = vmatpush1.bf16.msra.mxu0 %v852
    %872 = vmatprep.subr.bf16.mxu0 0
    %873 = vmatpush1.bf16.msra.mxu0 %v853
    %874 = vmatprep.subr.bf16.mxu0 0
    %875 = vmatpush1.bf16.msra.mxu0 %v854
    %876 = vmatprep.subr.bf16.mxu0 0
    %877 = vmatpush1.bf16.msra.mxu0 %v855
    %878 = vmatprep.subr.bf16.mxu0 0
    %879 = vmatpush1.bf16.msra.mxu0 %v856
    %880 = vmatprep.subr.bf16.mxu0 0
    %881 = vmatpush1.bf16.msra.mxu0 %v857
    %882 = vmatprep.subr.bf16.mxu0 0
    %883 = vmatpush1.bf16.msra.mxu0 0
    %884 = vmatprep.subr.bf16.mxu0 0
    %885 = vmatpush1.bf16.msra.mxu0 0
    %886 = vmatprep.subr.bf16.mxu0 0
    %887 = vmatpush1.bf16.msra.mxu0 0
    %888 = vmatprep.subr.bf16.mxu0 0
    %889 = vmatpush1.bf16.msra.mxu0 0
    %890 = vmatprep.subr.bf16.mxu0 0
    %891 = vmatpush1.bf16.msra.mxu0 0
    %892 = vmatprep.subr.bf16.mxu0 0
    %893 = vmatpush1.bf16.msra.mxu0 0
    %894 = vmatprep.subr.bf16.mxu0 0
    %895 = vmatpush1.bf16.msra.mxu0 0
    %896 = vmatprep.subr.bf16.mxu0 0
    %897 = vmatpush1.bf16.msra.mxu0 0
    %898 = vmatprep.mubr.bf16.mxu0 0
    %899 = vmatmul.mubr.bf16.gmra.mrb[0].mxu0 %v800
    %v900 = vpop.f32.mrb[0].mxu0
    %v901 = vadd.f32 %v817, %v900
    %v902 = vpop.f32.mrb[0].mxu0
    %v903 = vpop.f32.mrb[0].mxu0
    %v904 = vpop.f32.mrb[0].mxu0
    %905 = vdwg.mxu0
    %v906 = vmax.f32 %v901, 0.0
    %v907 = vpack.c.bf16 %v906, %v906
    %v908 = vld [vmem:[#allocation10] sm:$0xf]
    %v909 = vld [vmem:[#allocation10 + $0x4] sm:$0xf]
    %v910 = vld [vmem:[#allocation10 + $0x8] sm:$0xf]
    %v911 = vld [vmem:[#allocation10 + $0xc] sm:$0xf]
    %v912 = vld [vmem:[#allocation10 + $0x10] sm:$0xf]
    %v913 = vld [vmem:[#allocation10 + $0x14] sm:$0xf]
    %v914 = vld [vmem:[#allocation10 + $0x18] sm:$0xf]
    %v915 = vld [vmem:[#allocation10 + $0x1c] sm:$0xf]
    %v916 = vld [vmem:[#allocation10 + $0x20] sm:$0xf]
    %v917 = vld [vmem:[#allocation10 + $0x24] sm:$0xf]
    %v918 = vld [vmem:[#allocation10 + $0x28] sm:$0xf]
    %v919 = vld [vmem:[#allocation10 + $0x2c] sm:$0xf]
    %v920 = vld [vmem:[#allocation10 + $0x30] sm:$0xf]
    %v921 = vld [vmem:[#allocation10 + $0x34] sm:$0xf]
    %v922 = vld [vmem:[#allocation10 + $0x38] sm:$0xf]
    %v923 = vld [vmem:[#allocation10 + $0x3c] sm:$0xf]
    %v924 = vld [vmem:[%s9 + $0x3] ss:$0 sm:$0xff]
    %v941 = vunpack.c.l.b16 %v908
    %v942 = vunpack.c.l.b16 %v909
    %v943 = vunpack.c.l.b16 %v910
    %v944 = vunpack.c.l.b16 %v911
    %v945 = vunpack.c.l.b16 %v912
    %v946 = vunpack.c.l.b16 %v913
    %v947 = vunpack.c.l.b16 %v914
    %v948 = vunpack.c.l.b16 %v915
    %v949 = vunpack.c.l.b16 %v916
    %v950 = vunpack.c.l.b16 %v917
    %v951 = vunpack.c.l.b16 %v918
    %v952 = vunpack.c.l.b16 %v919
    %v953 = vunpack.c.l.b16 %v920
    %v954 = vunpack.c.l.b16 %v921
    %v955 = vunpack.c.l.b16 %v922
    %v956 = vunpack.c.l.b16 %v923
    %v957 = vpack.c.b16 %v942, %v941
    %v958 = vpack.c.b16 %v944, %v943
    %v959 = vpack.c.b16 %v946, %v945
    %v960 = vpack.c.b16 %v948, %v947
    %v961 = vpack.c.b16 %v950, %v949
    %v962 = vpack.c.b16 %v952, %v951
    %v963 = vpack.c.b16 %v954, %v953
    %v964 = vpack.c.b16 %v956, %v955
    %973 = vmatprep.subr.bf16.mxu0 0
    %974 = vmatpush1.bf16.msra.mxu0 %v957
    %975 = vmatprep.subr.bf16.mxu0 0
    %976 = vmatpush1.bf16.msra.mxu0 %v958
    %977 = vmatprep.subr.bf16.mxu0 0
    %978 = vmatpush1.bf16.msra.mxu0 %v959
    %979 = vmatprep.subr.bf16.mxu0 0
    %980 = vmatpush1.bf16.msra.mxu0 %v960
    %981 = vmatprep.subr.bf16.mxu0 0
    %982 = vmatpush1.bf16.msra.mxu0 %v961
    %983 = vmatprep.subr.bf16.mxu0 0
    %984 = vmatpush1.bf16.msra.mxu0 %v962
    %985 = vmatprep.subr.bf16.mxu0 0
    %986 = vmatpush1.bf16.msra.mxu0 %v963
    %987 = vmatprep.subr.bf16.mxu0 0
    %988 = vmatpush1.bf16.msra.mxu0 %v964
    %989 = vmatprep.subr.bf16.mxu0 0
    %990 = vmatpush1.bf16.msra.mxu0 0
    %991 = vmatprep.subr.bf16.mxu0 0
    %992 = vmatpush1.bf16.msra.mxu0 0
    %993 = vmatprep.subr.bf16.mxu0 0
    %994 = vmatpush1.bf16.msra.mxu0 0
    %995 = vmatprep.subr.bf16.mxu0 0
    %996 = vmatpush1.bf16.msra.mxu0 0
    %997 = vmatprep.subr.bf16.mxu0 0
    %998 = vmatpush1.bf16.msra.mxu0 0
    %999 = vmatprep.subr.bf16.mxu0 0
    %1000 = vmatpush1.bf16.msra.mxu0 0
    %1001 = vmatprep.subr.bf16.mxu0 0
    %1002 = vmatpush1.bf16.msra.mxu0 0
    %1003 = vmatprep.subr.bf16.mxu0 0
    %1004 = vmatpush1.bf16.msra.mxu0 0
    %1005 = vmatprep.mubr.bf16.mxu0 0
    %1006 = vmatmul.mubr.bf16.gmra.mrb[0].mxu0 %v907
    %v1007 = vpop.f32.mrb[0].mxu0
    %v1008 = vadd.f32 %v924, %v1007
    %v1009 = vpop.f32.mrb[0].mxu0
    %v1010 = vpop.f32.mrb[0].mxu0
    %v1011 = vpop.f32.mrb[0].mxu0
    %1012 = vdwg.mxu0
    %v1013 = vmax.f32 %v1008, 0.0
    %v1014 = vpack.c.bf16 %v1013, %v1013
    %v1015 = vld [vmem:[#allocation11] sm:$0xf]
    %v1016 = vld [vmem:[#allocation11 + $0x4] sm:$0xf]
    %v1017 = vld [vmem:[#allocation11 + $0x8] sm:$0xf]
    %v1018 = vld [vmem:[#allocation11 + $0xc] sm:$0xf]
    %v1019 = vld [vmem:[#allocation11 + $0x10] sm:$0xf]
    %v1020 = vld [vmem:[#allocation11 + $0x14] sm:$0xf]
    %v1021 = vld [vmem:[#allocation11 + $0x18] sm:$0xf]
    %v1022 = vld [vmem:[#allocation11 + $0x1c] sm:$0xf]
    %v1023 = vld [vmem:[#allocation11 + $0x20] sm:$0xf]
    %v1024 = vld [vmem:[#allocation11 + $0x24] sm:$0xf]
    %v1025 = vld [vmem:[#allocation11 + $0x28] sm:$0xf]
    %v1026 = vld [vmem:[#allocation11 + $0x2c] sm:$0xf]
    %v1027 = vld [vmem:[#allocation11 + $0x30] sm:$0xf]
    %v1028 = vld [vmem:[#allocation11 + $0x34] sm:$0xf]
    %v1029 = vld [vmem:[#allocation11 + $0x38] sm:$0xf]
    %v1030 = vld [vmem:[#allocation11 + $0x3c] sm:$0xf]
    %v1031 = vld [vmem:[%s9 + $0x4] ss:$0 sm:$0xff]
    %v1048 = vunpack.c.l.b16 %v1015
    %v1049 = vunpack.c.l.b16 %v1016
    %v1050 = vunpack.c.l.b16 %v1017
    %v1051 = vunpack.c.l.b16 %v1018
    %v1052 = vunpack.c.l.b16 %v1019
    %v1053 = vunpack.c.l.b16 %v1020
    %v1054 = vunpack.c.l.b16 %v1021
    %v1055 = vunpack.c.l.b16 %v1022
    %v1056 = vunpack.c.l.b16 %v1023
    %v1057 = vunpack.c.l.b16 %v1024
    %v1058 = vunpack.c.l.b16 %v1025
    %v1059 = vunpack.c.l.b16 %v1026
    %v1060 = vunpack.c.l.b16 %v1027
    %v1061 = vunpack.c.l.b16 %v1028
    %v1062 = vunpack.c.l.b16 %v1029
    %v1063 = vunpack.c.l.b16 %v1030
    %v1064 = vpack.c.b16 %v1049, %v1048
    %v1065 = vpack.c.b16 %v1051, %v1050
    %v1066 = vpack.c.b16 %v1053, %v1052
    %v1067 = vpack.c.b16 %v1055, %v1054
    %v1068 = vpack.c.b16 %v1057, %v1056
    %v1069 = vpack.c.b16 %v1059, %v1058
    %v1070 = vpack.c.b16 %v1061, %v1060
    %v1071 = vpack.c.b16 %v1063, %v1062
    %1080 = vmatprep.subr.bf16.mxu0 0
    %1081 = vmatpush1.bf16.msra.mxu0 %v1064
    %1082 = vmatprep.subr.bf16.mxu0 0
    %1083 = vmatpush1.bf16.msra.mxu0 %v1065
    %1084 = vmatprep.subr.bf16.mxu0 0
    %1085 = vmatpush1.bf16.msra.mxu0 %v1066
    %1086 = vmatprep.subr.bf16.mxu0 0
    %1087 = vmatpush1.bf16.msra.mxu0 %v1067
    %1088 = vmatprep.subr.bf16.mxu0 0
    %1089 = vmatpush1.bf16.msra.mxu0 %v1068
    %1090 = vmatprep.subr.bf16.mxu0 0
    %1091 = vmatpush1.bf16.msra.mxu0 %v1069
    %1092 = vmatprep.subr.bf16.mxu0 0
    %1093 = vmatpush1.bf16.msra.mxu0 %v1070
    %1094 = vmatprep.subr.bf16.mxu0 0
    %1095 = vmatpush1.bf16.msra.mxu0 %v1071
    %1096 = vmatprep.subr.bf16.mxu0 0
    %1097 = vmatpush1.bf16.msra.mxu0 0
    %1098 = vmatprep.subr.bf16.mxu0 0
    %1099 = vmatpush1.bf16.msra.mxu0 0
    %1100 = vmatprep.subr.bf16.mxu0 0
    %1101 = vmatpush1.bf16.msra.mxu0 0
    %1102 = vmatprep.subr.bf16.mxu0 0
    %1103 = vmatpush1.bf16.msra.mxu0 0
    %1104 = vmatprep.subr.bf16.mxu0 0
    %1105 = vmatpush1.bf16.msra.mxu0 0
    %1106 = vmatprep.subr.bf16.mxu0 0
    %1107 = vmatpush1.bf16.msra.mxu0 0
    %1108 = vmatprep.subr.bf16.mxu0 0
    %1109 = vmatpush1.bf16.msra.mxu0 0
    %1110 = vmatprep.subr.bf16.mxu0 0
    %1111 = vmatpush1.bf16.msra.mxu0 0
    %1112 = vmatprep.mubr.bf16.mxu0 0
    %1113 = vmatmul.mubr.bf16.gmra.mrb[0].mxu0 %v1014
    %v1114 = vpop.f32.mrb[0].mxu0
    %v1115 = vadd.f32 %v1031, %v1114
    %v1116 = vpop.f32.mrb[0].mxu0
    %v1117 = vpop.f32.mrb[0].mxu0
    %v1118 = vpop.f32.mrb[0].mxu0
    %1119 = vdwg.mxu0
    %v1120 = vmax.f32 %v1115, 0.0
    %v1121 = vpack.c.bf16 %v1120, %v1120
    %v1122 = vld [vmem:[#allocation13] sm:$0xf]
    %v1123 = vld [vmem:[#allocation13 + $0x4] sm:$0xf]
    %v1124 = vld [vmem:[#allocation13 + $0x8] sm:$0xf]
    %v1125 = vld [vmem:[#allocation13 + $0xc] sm:$0xf]
    %v1126 = vld [vmem:[#allocation13 + $0x10] sm:$0xf]
    %v1127 = vld [vmem:[#allocation13 + $0x14] sm:$0xf]
    %v1128 = vld [vmem:[#allocation13 + $0x18] sm:$0xf]
    %v1129 = vld [vmem:[#allocation13 + $0x1c] sm:$0xf]
    %v1130 = vld [vmem:[#allocation13 + $0x20] sm:$0xf]
    %v1131 = vld [vmem:[#allocation13 + $0x24] sm:$0xf]
    %v1132 = vld [vmem:[#allocation13 + $0x28] sm:$0xf]
    %v1133 = vld [vmem:[#allocation13 + $0x2c] sm:$0xf]
    %v1134 = vld [vmem:[#allocation13 + $0x30] sm:$0xf]
    %v1135 = vld [vmem:[#allocation13 + $0x34] sm:$0xf]
    %v1136 = vld [vmem:[#allocation13 + $0x38] sm:$0xf]
    %v1137 = vld [vmem:[#allocation13 + $0x3c] sm:$0xf]
    %v1138 = vld [vmem:[%s9 + $0x5] ss:$0 sm:$0xff]
    %v1155 = vunpack.c.l.b16 %v1122
    %v1156 = vunpack.c.l.b16 %v1123
    %v1157 = vunpack.c.l.b16 %v1124
    %v1158 = vunpack.c.l.b16 %v1125
    %v1159 = vunpack.c.l.b16 %v1126
    %v1160 = vunpack.c.l.b16 %v1127
    %v1161 = vunpack.c.l.b16 %v1128
    %v1162 = vunpack.c.l.b16 %v1129
    %v1163 = vunpack.c.l.b16 %v1130
    %v1164 = vunpack.c.l.b16 %v1131
    %v1165 = vunpack.c.l.b16 %v1132
    %v1166 = vunpack.c.l.b16 %v1133
    %v1167 = vunpack.c.l.b16 %v1134
    %v1168 = vunpack.c.l.b16 %v1135
    %v1169 = vunpack.c.l.b16 %v1136
    %v1170 = vunpack.c.l.b16 %v1137
    %v1171 = vpack.c.b16 %v1156, %v1155
    %v1172 = vpack.c.b16 %v1158, %v1157
    %v1173 = vpack.c.b16 %v1160, %v1159
    %v1174 = vpack.c.b16 %v1162, %v1161
    %v1175 = vpack.c.b16 %v1164, %v1163
    %v1176 = vpack.c.b16 %v1166, %v1165
    %v1177 = vpack.c.b16 %v1168, %v1167
    %v1178 = vpack.c.b16 %v1170, %v1169
    %1187 = vmatprep.subr.bf16.mxu0 0
    %1188 = vmatpush1.bf16.msra.mxu0 %v1171
    %1189 = vmatprep.subr.bf16.mxu0 0
    %1190 = vmatpush1.bf16.msra.mxu0 %v1172
    %1191 = vmatprep.subr.bf16.mxu0 0
    %1192 = vmatpush1.bf16.msra.mxu0 %v1173
    %1193 = vmatprep.subr.bf16.mxu0 0
    %1194 = vmatpush1.bf16.msra.mxu0 %v1174
    %1195 = vmatprep.subr.bf16.mxu0 0
    %1196 = vmatpush1.bf16.msra.mxu0 %v1175
    %1197 = vmatprep.subr.bf16.mxu0 0
    %1198 = vmatpush1.bf16.msra.mxu0 %v1176
    %1199 = vmatprep.subr.bf16.mxu0 0
    %1200 = vmatpush1.bf16.msra.mxu0 %v1177
    %1201 = vmatprep.subr.bf16.mxu0 0
    %1202 = vmatpush1.bf16.msra.mxu0 %v1178
    %1203 = vmatprep.subr.bf16.mxu0 0
    %1204 = vmatpush1.bf16.msra.mxu0 0
    %1205 = vmatprep.subr.bf16.mxu0 0
    %1206 = vmatpush1.bf16.msra.mxu0 0
    %1207 = vmatprep.subr.bf16.mxu0 0
    %1208 = vmatpush1.bf16.msra.mxu0 0
    %1209 = vmatprep.subr.bf16.mxu0 0
    %1210 = vmatpush1.bf16.msra.mxu0 0
    %1211 = vmatprep.subr.bf16.mxu0 0
    %1212 = vmatpush1.bf16.msra.mxu0 0
    %1213 = vmatprep.subr.bf16.mxu0 0
    %1214 = vmatpush1.bf16.msra.mxu0 0
    %1215 = vmatprep.subr.bf16.mxu0 0
    %1216 = vmatpush1.bf16.msra.mxu0 0
    %1217 = vmatprep.subr.bf16.mxu0 0
    %1218 = vmatpush1.bf16.msra.mxu0 0
    %1219 = vmatprep.mubr.bf16.mxu0 0
    %1220 = vmatmul.mubr.bf16.gmra.mrb[0].mxu0 %v1121
    %v1221 = vpop.f32.mrb[0].mxu0
    %v1222 = vadd.f32 %v1138, %v1221
    %v1223 = vpop.f32.mrb[0].mxu0
    %v1224 = vpop.f32.mrb[0].mxu0
    %v1225 = vpop.f32.mrb[0].mxu0
    %1226 = vdwg.mxu0
    %v1227 = vmax.f32 %v1222, 0.0
    %v1228 = vpack.c.bf16 %v1227, %v1227
    %v1229 = vld [vmem:[#allocation14] sm:$0xff]
    %v1230 = vld [vmem:[#allocation14 + $0x8] sm:$0xff]
    %v1231 = vld [vmem:[#allocation14 + $0x10] sm:$0xff]
    %v1232 = vld [vmem:[#allocation14 + $0x18] sm:$0xff]
    %v1233 = vld [vmem:[#allocation14 + $0x20] sm:$0xff]
    %v1234 = vld [vmem:[#allocation14 + $0x28] sm:$0xff]
    %v1235 = vld [vmem:[#allocation14 + $0x30] sm:$0xff]
    %v1236 = vld [vmem:[#allocation14 + $0x38] sm:$0xff]
    %v1237 = vld [vmem:[#allocation14 + $0x40] sm:$0xff]
    %v1238 = vld [vmem:[#allocation14 + $0x48] sm:$0xff]
    %v1239 = vld [vmem:[#allocation14 + $0x50] sm:$0xff]
    %v1240 = vld [vmem:[#allocation14 + $0x58] sm:$0xff]
    %v1241 = vld [vmem:[#allocation14 + $0x60] sm:$0xff]
    %v1242 = vld [vmem:[#allocation14 + $0x68] sm:$0xff]
    %v1243 = vld [vmem:[#allocation14 + $0x70] sm:$0xff]
    %v1244 = vld [vmem:[#allocation14 + $0x78] sm:$0xff]
    %v1245 = vld [vmem:[#allocation14 + $0x80] sm:$0xff]
    %v1246 = vld [vmem:[#allocation14 + $0x88] sm:$0xff]
    %v1247 = vld [vmem:[#allocation14 + $0x90] sm:$0xff]
    %v1248 = vld [vmem:[#allocation14 + $0x98] sm:$0xff]
    %v1249 = vld [vmem:[#allocation14 + $0xa0] sm:$0xff]
    %v1250 = vld [vmem:[#allocation14 + $0xa8] sm:$0xff]
    %v1251 = vld [vmem:[#allocation14 + $0xb0] sm:$0xff]
    %v1252 = vld [vmem:[#allocation14 + $0xb8] sm:$0xff]
    %v1253 = vld [vmem:[#allocation14 + $0xc0] sm:$0xff]
    %v1254 = vld [vmem:[#allocation14 + $0xc8] sm:$0xff]
    %v1255 = vld [vmem:[#allocation14 + $0xd0] sm:$0xff]
    %v1256 = vld [vmem:[#allocation14 + $0xd8] sm:$0xff]
    %v1257 = vld [vmem:[#allocation14 + $0xe0] sm:$0xff]
    %v1258 = vld [vmem:[#allocation14 + $0xe8] sm:$0xff]
    %v1259 = vld [vmem:[#allocation14 + $0xf0] sm:$0xff]
    %v1260 = vld [vmem:[#allocation14 + $0xf8] sm:$0xff]
    %s1261 = scalar_lea.vmem %s9, 6
    %v1262 = vld [vmem:[%s1261] ss:$8 sm:$0xf]
    %v1264 = vlaneseq
    %v1265 = vshrl.u32 %v1264, 7
    %v1266 = vsub.s32 0, %v1265
    %v1267 = vrot.slane %v1262, %v1266
    %v1268 = vlaneseq
    %v1269 = vshrl.u32 %v1268, 7
    %v1270 = vsub.s32 1, %v1269
    %v1271 = vrot.slane %v1262, %v1270
    %v1272 = vlaneseq
    %v1273 = vshrl.u32 %v1272, 7
    %v1274 = vsub.s32 2, %v1273
    %v1275 = vrot.slane %v1262, %v1274
    %v1276 = vlaneseq
    %v1277 = vshrl.u32 %v1276, 7
    %v1278 = vsub.s32 3, %v1277
    %v1279 = vrot.slane %v1262, %v1278
    %v1316 = vunpack.c.l.b16 %v1229
    %v1317 = vunpack.c.h.b16 %v1229
    %v1318 = vunpack.c.l.b16 %v1230
    %v1319 = vunpack.c.h.b16 %v1230
    %v1320 = vunpack.c.l.b16 %v1231
    %v1321 = vunpack.c.h.b16 %v1231
    %v1322 = vunpack.c.l.b16 %v1232
    %v1323 = vunpack.c.h.b16 %v1232
    %v1324 = vunpack.c.l.b16 %v1233
    %v1325 = vunpack.c.h.b16 %v1233
    %v1326 = vunpack.c.l.b16 %v1234
    %v1327 = vunpack.c.h.b16 %v1234
    %v1328 = vunpack.c.l.b16 %v1235
    %v1329 = vunpack.c.h.b16 %v1235
    %v1330 = vunpack.c.l.b16 %v1236
    %v1331 = vunpack.c.h.b16 %v1236
    %v1332 = vunpack.c.l.b16 %v1237
    %v1333 = vunpack.c.h.b16 %v1237
    %v1334 = vunpack.c.l.b16 %v1238
    %v1335 = vunpack.c.h.b16 %v1238
    %v1336 = vunpack.c.l.b16 %v1239
    %v1337 = vunpack.c.h.b16 %v1239
    %v1338 = vunpack.c.l.b16 %v1240
    %v1339 = vunpack.c.h.b16 %v1240
    %v1340 = vunpack.c.l.b16 %v1241
    %v1341 = vunpack.c.h.b16 %v1241
    %v1342 = vunpack.c.l.b16 %v1242
    %v1343 = vunpack.c.h.b16 %v1242
    %v1344 = vunpack.c.l.b16 %v1243
    %v1345 = vunpack.c.h.b16 %v1243
    %v1346 = vunpack.c.l.b16 %v1244
    %v1347 = vunpack.c.h.b16 %v1244
    %v1348 = vunpack.c.l.b16 %v1245
    %v1349 = vunpack.c.h.b16 %v1245
    %v1350 = vunpack.c.l.b16 %v1246
    %v1351 = vunpack.c.h.b16 %v1246
    %v1352 = vunpack.c.l.b16 %v1247
    %v1353 = vunpack.c.h.b16 %v1247
    %v1354 = vunpack.c.l.b16 %v1248
    %v1355 = vunpack.c.h.b16 %v1248
    %v1356 = vunpack.c.l.b16 %v1249
    %v1357 = vunpack.c.h.b16 %v1249
    %v1358 = vunpack.c.l.b16 %v1250
    %v1359 = vunpack.c.h.b16 %v1250
    %v1360 = vunpack.c.l.b16 %v1251
    %v1361 = vunpack.c.h.b16 %v1251
    %v1362 = vunpack.c.l.b16 %v1252
    %v1363 = vunpack.c.h.b16 %v1252
    %v1364 = vunpack.c.l.b16 %v1253
    %v1365 = vunpack.c.h.b16 %v1253
    %v1366 = vunpack.c.l.b16 %v1254
    %v1367 = vunpack.c.h.b16 %v1254
    %v1368 = vunpack.c.l.b16 %v1255
    %v1369 = vunpack.c.h.b16 %v1255
    %v1370 = vunpack.c.l.b16 %v1256
    %v1371 = vunpack.c.h.b16 %v1256
    %v1372 = vunpack.c.l.b16 %v1257
    %v1373 = vunpack.c.h.b16 %v1257
    %v1374 = vunpack.c.l.b16 %v1258
    %v1375 = vunpack.c.h.b16 %v1258
    %v1376 = vunpack.c.l.b16 %v1259
    %v1377 = vunpack.c.h.b16 %v1259
    %v1378 = vunpack.c.l.b16 %v1260
    %v1379 = vunpack.c.h.b16 %v1260
    %v1380 = vpack.c.b16 %v1320, %v1316
    %v1381 = vpack.c.b16 %v1321, %v1317
    %v1382 = vpack.c.b16 %v1322, %v1318
    %v1383 = vpack.c.b16 %v1323, %v1319
    %v1384 = vpack.c.b16 %v1328, %v1324
    %v1385 = vpack.c.b16 %v1329, %v1325
    %v1386 = vpack.c.b16 %v1330, %v1326
    %v1387 = vpack.c.b16 %v1331, %v1327
    %v1388 = vpack.c.b16 %v1336, %v1332
    %v1389 = vpack.c.b16 %v1337, %v1333
    %v1390 = vpack.c.b16 %v1338, %v1334
    %v1391 = vpack.c.b16 %v1339, %v1335
    %v1392 = vpack.c.b16 %v1344, %v1340
    %v1393 = vpack.c.b16 %v1345, %v1341
    %v1394 = vpack.c.b16 %v1346, %v1342
    %v1395 = vpack.c.b16 %v1347, %v1343
    %v1396 = vpack.c.b16 %v1352, %v1348
    %v1397 = vpack.c.b16 %v1353, %v1349
    %v1398 = vpack.c.b16 %v1354, %v1350
    %v1399 = vpack.c.b16 %v1355, %v1351
    %v1400 = vpack.c.b16 %v1360, %v1356
    %v1401 = vpack.c.b16 %v1361, %v1357
    %v1402 = vpack.c.b16 %v1362, %v1358
    %v1403 = vpack.c.b16 %v1363, %v1359
    %v1404 = vpack.c.b16 %v1368, %v1364
    %v1405 = vpack.c.b16 %v1369, %v1365
    %v1406 = vpack.c.b16 %v1370, %v1366
    %v1407 = vpack.c.b16 %v1371, %v1367
    %v1408 = vpack.c.b16 %v1376, %v1372
    %v1409 = vpack.c.b16 %v1377, %v1373
    %v1410 = vpack.c.b16 %v1378, %v1374
    %v1411 = vpack.c.b16 %v1379, %v1375
    %1444 = vmatprep.subr.bf16.mxu0 %v1381
    %1445 = vmatpush1.bf16.msra.mxu0 %v1380
    %1446 = vmatprep.subr.bf16.mxu0 %v1385
    %1447 = vmatpush1.bf16.msra.mxu0 %v1384
    %1448 = vmatprep.subr.bf16.mxu0 %v1389
    %1449 = vmatpush1.bf16.msra.mxu0 %v1388
    %1450 = vmatprep.subr.bf16.mxu0 %v1393
    %1451 = vmatpush1.bf16.msra.mxu0 %v1392
    %1452 = vmatprep.subr.bf16.mxu0 %v1397
    %1453 = vmatpush1.bf16.msra.mxu0 %v1396
    %1454 = vmatprep.subr.bf16.mxu0 %v1401
    %1455 = vmatpush1.bf16.msra.mxu0 %v1400
    %1456 = vmatprep.subr.bf16.mxu0 %v1405
    %1457 = vmatpush1.bf16.msra.mxu0 %v1404
    %1458 = vmatprep.subr.bf16.mxu0 %v1409
    %1459 = vmatpush1.bf16.msra.mxu0 %v1408
    %1460 = vmatprep.subr.bf16.mxu0 0
    %1461 = vmatpush1.bf16.msra.mxu0 0
    %1462 = vmatprep.subr.bf16.mxu0 0
    %1463 = vmatpush1.bf16.msra.mxu0 0
    %1464 = vmatprep.subr.bf16.mxu0 0
    %1465 = vmatpush1.bf16.msra.mxu0 0
    %1466 = vmatprep.subr.bf16.mxu0 0
    %1467 = vmatpush1.bf16.msra.mxu0 0
    %1468 = vmatprep.subr.bf16.mxu0 0
    %1469 = vmatpush1.bf16.msra.mxu0 0
    %1470 = vmatprep.subr.bf16.mxu0 0
    %1471 = vmatpush1.bf16.msra.mxu0 0
    %1472 = vmatprep.subr.bf16.mxu0 0
    %1473 = vmatpush1.bf16.msra.mxu0 0
    %1474 = vmatprep.subr.bf16.mxu0 0
    %1475 = vmatpush1.bf16.msra.mxu0 0
    %1476 = vmatprep.mubr.bf16.mxu0 0
    %1477 = vmatmul.mubr.bf16.gmra.mrb[0].mxu0 %v1228
    %v1478 = vpop.f32.mrb[0].mxu0
    %v1479 = vadd.f32 %v1267, %v1478
    %v1480 = vpop.f32.mrb[0].mxu0
    %v1481 = vadd.f32 %v1271, %v1480
    %v1482 = vpop.f32.mrb[0].mxu0
    %v1483 = vpop.f32.mrb[0].mxu0
    %1484 = vdwg.mxu0
    %1485 = vmatprep.subr.bf16.mxu0 %v1383
    %1486 = vmatpush1.bf16.msra.mxu0 %v1382
    %1487 = vmatprep.subr.bf16.mxu0 %v1387
    %1488 = vmatpush1.bf16.msra.mxu0 %v1386
    %1489 = vmatprep.subr.bf16.mxu0 %v1391
    %1490 = vmatpush1.bf16.msra.mxu0 %v1390
    %1491 = vmatprep.subr.bf16.mxu0 %v1395
    %1492 = vmatpush1.bf16.msra.mxu0 %v1394
    %1493 = vmatprep.subr.bf16.mxu0 %v1399
    %1494 = vmatpush1.bf16.msra.mxu0 %v1398
    %1495 = vmatprep.subr.bf16.mxu0 %v1403
    %1496 = vmatpush1.bf16.msra.mxu0 %v1402
    %1497 = vmatprep.subr.bf16.mxu0 %v1407
    %1498 = vmatpush1.bf16.msra.mxu0 %v1406
    %1499 = vmatprep.subr.bf16.mxu0 %v1411
    %1500 = vmatpush1.bf16.msra.mxu0 %v1410
    %1501 = vmatprep.subr.bf16.mxu0 0
    %1502 = vmatpush1.bf16.msra.mxu0 0
    %1503 = vmatprep.subr.bf16.mxu0 0
    %1504 = vmatpush1.bf16.msra.mxu0 0
    %1505 = vmatprep.subr.bf16.mxu0 0
    %1506 = vmatpush1.bf16.msra.mxu0 0
    %1507 = vmatprep.subr.bf16.mxu0 0
    %1508 = vmatpush1.bf16.msra.mxu0 0
    %1509 = vmatprep.subr.bf16.mxu0 0
    %1510 = vmatpush1.bf16.msra.mxu0 0
    %1511 = vmatprep.subr.bf16.mxu0 0
    %1512 = vmatpush1.bf16.msra.mxu0 0
    %1513 = vmatprep.subr.bf16.mxu0 0
    %1514 = vmatpush1.bf16.msra.mxu0 0
    %1515 = vmatprep.subr.bf16.mxu0 0
    %1516 = vmatpush1.bf16.msra.mxu0 0
    %1517 = vmatprep.mubr.bf16.mxu0 0
    %1518 = vmatmul.mubr.bf16.gmra.mrb[0].mxu0 %v1228
    %v1519 = vpop.f32.mrb[0].mxu0
    %v1520 = vadd.f32 %v1275, %v1519
    %v1521 = vpop.f32.mrb[0].mxu0
    %v1522 = vadd.f32 %v1279, %v1521
    %v1523 = vpop.f32.mrb[0].mxu0
    %v1524 = vpop.f32.mrb[0].mxu0
    %1525 = vdwg.mxu0
    %v1526 = vmax.f32 %v1479, 0.0
    %v1527 = vmax.f32 %v1481, 0.0
    %v1528 = vmax.f32 %v1520, 0.0
    %v1529 = vmax.f32 %v1522, 0.0
    %v1530 = vpack.c.bf16 %v1526, %v1526
    %v1531 = vpack.c.bf16 %v1527, %v1527
    %v1532 = vpack.c.bf16 %v1528, %v1528
    %v1533 = vpack.c.bf16 %v1529, %v1529
    %v1534 = vld [vmem:[#allocation16] sm:$0xf]
    %v1535 = vld [vmem:[#allocation16 + $0x4] sm:$0xf]
    %v1536 = vld [vmem:[#allocation16 + $0x8] sm:$0xf]
    %v1537 = vld [vmem:[#allocation16 + $0xc] sm:$0xf]
    %v1538 = vld [vmem:[#allocation16 + $0x10] sm:$0xf]
    %v1539 = vld [vmem:[#allocation16 + $0x14] sm:$0xf]
    %v1540 = vld [vmem:[#allocation16 + $0x18] sm:$0xf]
    %v1541 = vld [vmem:[#allocation16 + $0x1c] sm:$0xf]
    %v1542 = vld [vmem:[#allocation16 + $0x20] sm:$0xf]
    %v1543 = vld [vmem:[#allocation16 + $0x24] sm:$0xf]
    %v1544 = vld [vmem:[#allocation16 + $0x28] sm:$0xf]
    %v1545 = vld [vmem:[#allocation16 + $0x2c] sm:$0xf]
    %v1546 = vld [vmem:[#allocation16 + $0x30] sm:$0xf]
    %v1547 = vld [vmem:[#allocation16 + $0x34] sm:$0xf]
    %v1548 = vld [vmem:[#allocation16 + $0x38] sm:$0xf]
    %v1549 = vld [vmem:[#allocation16 + $0x3c] sm:$0xf]
    %v1550 = vld [vmem:[#allocation16 + $0x40] sm:$0xf]
    %v1551 = vld [vmem:[#allocation16 + $0x44] sm:$0xf]
    %v1552 = vld [vmem:[#allocation16 + $0x48] sm:$0xf]
    %v1553 = vld [vmem:[#allocation16 + $0x4c] sm:$0xf]
    %v1554 = vld [vmem:[#allocation16 + $0x50] sm:$0xf]
    %v1555 = vld [vmem:[#allocation16 + $0x54] sm:$0xf]
    %v1556 = vld [vmem:[#allocation16 + $0x58] sm:$0xf]
    %v1557 = vld [vmem:[#allocation16 + $0x5c] sm:$0xf]
    %v1558 = vld [vmem:[#allocation16 + $0x60] sm:$0xf]
    %v1559 = vld [vmem:[#allocation16 + $0x64] sm:$0xf]
    %v1560 = vld [vmem:[#allocation16 + $0x68] sm:$0xf]
    %v1561 = vld [vmem:[#allocation16 + $0x6c] sm:$0xf]
    %v1562 = vld [vmem:[#allocation16 + $0x70] sm:$0xf]
    %v1563 = vld [vmem:[#allocation16 + $0x74] sm:$0xf]
    %v1564 = vld [vmem:[#allocation16 + $0x78] sm:$0xf]
    %v1565 = vld [vmem:[#allocation16 + $0x7c] sm:$0xf]
    %v1566 = vld [vmem:[#allocation16 + $0x80] sm:$0xf]
    %v1567 = vld [vmem:[#allocation16 + $0x84] sm:$0xf]
    %v1568 = vld [vmem:[#allocation16 + $0x88] sm:$0xf]
    %v1569 = vld [vmem:[#allocation16 + $0x8c] sm:$0xf]
    %v1570 = vld [vmem:[#allocation16 + $0x90] sm:$0xf]
    %v1571 = vld [vmem:[#allocation16 + $0x94] sm:$0xf]
    %v1572 = vld [vmem:[#allocation16 + $0x98] sm:$0xf]
    %v1573 = vld [vmem:[#allocation16 + $0x9c] sm:$0xf]
    %v1574 = vld [vmem:[#allocation16 + $0xa0] sm:$0xf]
    %v1575 = vld [vmem:[#allocation16 + $0xa4] sm:$0xf]
    %v1576 = vld [vmem:[#allocation16 + $0xa8] sm:$0xf]
    %v1577 = vld [vmem:[#allocation16 + $0xac] sm:$0xf]
    %v1578 = vld [vmem:[#allocation16 + $0xb0] sm:$0xf]
    %v1579 = vld [vmem:[#allocation16 + $0xb4] sm:$0xf]
    %v1580 = vld [vmem:[#allocation16 + $0xb8] sm:$0xf]
    %v1581 = vld [vmem:[#allocation16 + $0xbc] sm:$0xf]
    %v1582 = vld [vmem:[#allocation16 + $0xc0] sm:$0xf]
    %v1583 = vld [vmem:[#allocation16 + $0xc4] sm:$0xf]
    %v1584 = vld [vmem:[#allocation16 + $0xc8] sm:$0xf]
    %v1585 = vld [vmem:[#allocation16 + $0xcc] sm:$0xf]
    %v1586 = vld [vmem:[#allocation16 + $0xd0] sm:$0xf]
    %v1587 = vld [vmem:[#allocation16 + $0xd4] sm:$0xf]
    %v1588 = vld [vmem:[#allocation16 + $0xd8] sm:$0xf]
    %v1589 = vld [vmem:[#allocation16 + $0xdc] sm:$0xf]
    %v1590 = vld [vmem:[#allocation16 + $0xe0] sm:$0xf]
    %v1591 = vld [vmem:[#allocation16 + $0xe4] sm:$0xf]
    %v1592 = vld [vmem:[#allocation16 + $0xe8] sm:$0xf]
    %v1593 = vld [vmem:[#allocation16 + $0xec] sm:$0xf]
    %v1594 = vld [vmem:[#allocation16 + $0xf0] sm:$0xf]
    %v1595 = vld [vmem:[#allocation16 + $0xf4] sm:$0xf]
    %v1596 = vld [vmem:[#allocation16 + $0xf8] sm:$0xf]
    %v1597 = vld [vmem:[#allocation16 + $0xfc] sm:$0xf]
    %v1598 = vld [vmem:[%s9 + $0x7] ss:$0 sm:$0xff]
    %v1663 = vunpack.c.l.b16 %v1534
    %v1664 = vunpack.c.l.b16 %v1535
    %v1665 = vunpack.c.l.b16 %v1536
    %v1666 = vunpack.c.l.b16 %v1537
    %v1667 = vunpack.c.l.b16 %v1538
    %v1668 = vunpack.c.l.b16 %v1539
    %v1669 = vunpack.c.l.b16 %v1540
    %v1670 = vunpack.c.l.b16 %v1541
    %v1671 = vunpack.c.l.b16 %v1542
    %v1672 = vunpack.c.l.b16 %v1543
    %v1673 = vunpack.c.l.b16 %v1544
    %v1674 = vunpack.c.l.b16 %v1545
    %v1675 = vunpack.c.l.b16 %v1546
    %v1676 = vunpack.c.l.b16 %v1547
    %v1677 = vunpack.c.l.b16 %v1548
    %v1678 = vunpack.c.l.b16 %v1549
    %v1679 = vunpack.c.l.b16 %v1550
    %v1680 = vunpack.c.l.b16 %v1551
    %v1681 = vunpack.c.l.b16 %v1552
    %v1682 = vunpack.c.l.b16 %v1553
    %v1683 = vunpack.c.l.b16 %v1554
    %v1684 = vunpack.c.l.b16 %v1555
    %v1685 = vunpack.c.l.b16 %v1556
    %v1686 = vunpack.c.l.b16 %v1557
    %v1687 = vunpack.c.l.b16 %v1558
    %v1688 = vunpack.c.l.b16 %v1559
    %v1689 = vunpack.c.l.b16 %v1560
    %v1690 = vunpack.c.l.b16 %v1561
    %v1691 = vunpack.c.l.b16 %v1562
    %v1692 = vunpack.c.l.b16 %v1563
    %v1693 = vunpack.c.l.b16 %v1564
    %v1694 = vunpack.c.l.b16 %v1565
    %v1695 = vunpack.c.l.b16 %v1566
    %v1696 = vunpack.c.l.b16 %v1567
    %v1697 = vunpack.c.l.b16 %v1568
    %v1698 = vunpack.c.l.b16 %v1569
    %v1699 = vunpack.c.l.b16 %v1570
    %v1700 = vunpack.c.l.b16 %v1571
    %v1701 = vunpack.c.l.b16 %v1572
    %v1702 = vunpack.c.l.b16 %v1573
    %v1703 = vunpack.c.l.b16 %v1574
    %v1704 = vunpack.c.l.b16 %v1575
    %v1705 = vunpack.c.l.b16 %v1576
    %v1706 = vunpack.c.l.b16 %v1577
    %v1707 = vunpack.c.l.b16 %v1578
    %v1708 = vunpack.c.l.b16 %v1579
    %v1709 = vunpack.c.l.b16 %v1580
    %v1710 = vunpack.c.l.b16 %v1581
    %v1711 = vunpack.c.l.b16 %v1582
    %v1712 = vunpack.c.l.b16 %v1583
    %v1713 = vunpack.c.l.b16 %v1584
    %v1714 = vunpack.c.l.b16 %v1585
    %v1715 = vunpack.c.l.b16 %v1586
    %v1716 = vunpack.c.l.b16 %v1587
    %v1717 = vunpack.c.l.b16 %v1588
    %v1718 = vunpack.c.l.b16 %v1589
    %v1719 = vunpack.c.l.b16 %v1590
    %v1720 = vunpack.c.l.b16 %v1591
    %v1721 = vunpack.c.l.b16 %v1592
    %v1722 = vunpack.c.l.b16 %v1593
    %v1723 = vunpack.c.l.b16 %v1594
    %v1724 = vunpack.c.l.b16 %v1595
    %v1725 = vunpack.c.l.b16 %v1596
    %v1726 = vunpack.c.l.b16 %v1597
    %v1727 = vpack.c.b16 %v1664, %v1663
    %v1728 = vpack.c.b16 %v1666, %v1665
    %v1729 = vpack.c.b16 %v1668, %v1667
    %v1730 = vpack.c.b16 %v1670, %v1669
    %v1731 = vpack.c.b16 %v1672, %v1671
    %v1732 = vpack.c.b16 %v1674, %v1673
    %v1733 = vpack.c.b16 %v1676, %v1675
    %v1734 = vpack.c.b16 %v1678, %v1677
    %v1735 = vpack.c.b16 %v1680, %v1679
    %v1736 = vpack.c.b16 %v1682, %v1681
    %v1737 = vpack.c.b16 %v1684, %v1683
    %v1738 = vpack.c.b16 %v1686, %v1685
    %v1739 = vpack.c.b16 %v1688, %v1687
    %v1740 = vpack.c.b16 %v1690, %v1689
    %v1741 = vpack.c.b16 %v1692, %v1691
    %v1742 = vpack.c.b16 %v1694, %v1693
    %v1743 = vpack.c.b16 %v1696, %v1695
    %v1744 = vpack.c.b16 %v1698, %v1697
    %v1745 = vpack.c.b16 %v1700, %v1699
    %v1746 = vpack.c.b16 %v1702, %v1701
    %v1747 = vpack.c.b16 %v1704, %v1703
    %v1748 = vpack.c.b16 %v1706, %v1705
    %v1749 = vpack.c.b16 %v1708, %v1707
    %v1750 = vpack.c.b16 %v1710, %v1709
    %v1751 = vpack.c.b16 %v1712, %v1711
    %v1752 = vpack.c.b16 %v1714, %v1713
    %v1753 = vpack.c.b16 %v1716, %v1715
    %v1754 = vpack.c.b16 %v1718, %v1717
    %v1755 = vpack.c.b16 %v1720, %v1719
    %v1756 = vpack.c.b16 %v1722, %v1721
    %v1757 = vpack.c.b16 %v1724, %v1723
    %v1758 = vpack.c.b16 %v1726, %v1725
    %1791 = vmatprep.subr.bf16.mxu0 0
    %1792 = vmatpush1.bf16.msra.mxu0 %v1727
    %1793 = vmatprep.subr.bf16.mxu0 0
    %1794 = vmatpush1.bf16.msra.mxu0 %v1728
    %1795 = vmatprep.subr.bf16.mxu0 0
    %1796 = vmatpush1.bf16.msra.mxu0 %v1729
    %1797 = vmatprep.subr.bf16.mxu0 0
    %1798 = vmatpush1.bf16.msra.mxu0 %v1730
    %1799 = vmatprep.subr.bf16.mxu0 0
    %1800 = vmatpush1.bf16.msra.mxu0 %v1731
    %1801 = vmatprep.subr.bf16.mxu0 0
    %1802 = vmatpush1.bf16.msra.mxu0 %v1732
    %1803 = vmatprep.subr.bf16.mxu0 0
    %1804 = vmatpush1.bf16.msra.mxu0 %v1733
    %1805 = vmatprep.subr.bf16.mxu0 0
    %1806 = vmatpush1.bf16.msra.mxu0 %v1734
    %1807 = vmatprep.subr.bf16.mxu0 0
    %1808 = vmatpush1.bf16.msra.mxu0 %v1735
    %1809 = vmatprep.subr.bf16.mxu0 0
    %1810 = vmatpush1.bf16.msra.mxu0 %v1736
    %1811 = vmatprep.subr.bf16.mxu0 0
    %1812 = vmatpush1.bf16.msra.mxu0 %v1737
    %1813 = vmatprep.subr.bf16.mxu0 0
    %1814 = vmatpush1.bf16.msra.mxu0 %v1738
    %1815 = vmatprep.subr.bf16.mxu0 0
    %1816 = vmatpush1.bf16.msra.mxu0 %v1739
    %1817 = vmatprep.subr.bf16.mxu0 0
    %1818 = vmatpush1.bf16.msra.mxu0 %v1740
    %1819 = vmatprep.subr.bf16.mxu0 0
    %1820 = vmatpush1.bf16.msra.mxu0 %v1741
    %1821 = vmatprep.subr.bf16.mxu0 0
    %1822 = vmatpush1.bf16.msra.mxu0 %v1742
    %1823 = vmatprep.mubr.bf16.mxu0 %v1531
    %1824 = vmatmul.mubr.bf16.gmra.mrb[0].mxu0 %v1530
    %v1825 = vpop.f32.mrb[0].mxu0
    %v1826 = vadd.f32 %v1598, %v1825
    %v1827 = vpop.f32.mrb[0].mxu0
    %v1828 = vpop.f32.mrb[0].mxu0
    %v1829 = vpop.f32.mrb[0].mxu0
    %1830 = vdwg.mxu0
    %1831 = vmatprep.subr.bf16.mxu0 0
    %1832 = vmatpush1.bf16.msra.mxu0 %v1743
    %1833 = vmatprep.subr.bf16.mxu0 0
    %1834 = vmatpush1.bf16.msra.mxu0 %v1744
    %1835 = vmatprep.subr.bf16.mxu0 0
    %1836 = vmatpush1.bf16.msra.mxu0 %v1745
    %1837 = vmatprep.subr.bf16.mxu0 0
    %1838 = vmatpush1.bf16.msra.mxu0 %v1746
    %1839 = vmatprep.subr.bf16.mxu0 0
    %1840 = vmatpush1.bf16.msra.mxu0 %v1747
    %1841 = vmatprep.subr.bf16.mxu0 0
    %1842 = vmatpush1.bf16.msra.mxu0 %v1748
    %1843 = vmatprep.subr.bf16.mxu0 0
    %1844 = vmatpush1.bf16.msra.mxu0 %v1749
    %1845 = vmatprep.subr.bf16.mxu0 0
    %1846 = vmatpush1.bf16.msra.mxu0 %v1750
    %1847 = vmatprep.subr.bf16.mxu0 0
    %1848 = vmatpush1.bf16.msra.mxu0 %v1751
    %1849 = vmatprep.subr.bf16.mxu0 0
    %1850 = vmatpush1.bf16.msra.mxu0 %v1752
    %1851 = vmatprep.subr.bf16.mxu0 0
    %1852 = vmatpush1.bf16.msra.mxu0 %v1753
    %1853 = vmatprep.subr.bf16.mxu0 0
    %1854 = vmatpush1.bf16.msra.mxu0 %v1754
    %1855 = vmatprep.subr.bf16.mxu0 0
    %1856 = vmatpush1.bf16.msra.mxu0 %v1755
    %1857 = vmatprep.subr.bf16.mxu0 0
    %1858 = vmatpush1.bf16.msra.mxu0 %v1756
    %1859 = vmatprep.subr.bf16.mxu0 0
    %1860 = vmatpush1.bf16.msra.mxu0 %v1757
    %1861 = vmatprep.subr.bf16.mxu0 0
    %1862 = vmatpush1.bf16.msra.mxu0 %v1758
    %1863 = vmatprep.mubr.bf16.mxu0 %v1533
    %1864 = vmatmul.mubr.bf16.gmra.mrb[0].mxu0 %v1532
    %v1865 = vpop.f32.mrb[0].mxu0
    %v1866 = vadd.f32 %v1826, %v1865
    %v1867 = vpop.f32.mrb[0].mxu0
    %v1868 = vpop.f32.mrb[0].mxu0
    %v1869 = vpop.f32.mrb[0].mxu0
    %1870 = vdwg.mxu0
    %v1871 = vsub.f32 0.0, %v1866
    %v1872 = vmul.f32 %v1871, 1.442695
    %v1873 = vpow.pop %v1872
    %v1874 = vadd.f32 %v1873, 1.0
    %v1875 = vrcp.pop %v1874
    %1876 = vst [vmem:[#allocation17] sm:$0xff] %v1875
    // Predicated region
    $region78: #{tpu_custom_call.1} parent=1 // pred_check
      _
    $region79: #{tpu_custom_call.1} parent=1 // pred_check_branch
      %1878 = sbr.rel (0) target = $region81
    $region80: #{tpu_custom_call.1} parent=1 // pred_region
      %s1880 = ssub.s32 128, 128
      %1881 = vsyncadd [#allocation4], %s1880
      %s1883 = sshll.u32 [#allocation17], 4
      %s1884 = int_to_ptr.vmem [resolvable:$true] %s1883
      %1886 = dma.vmem_to_hbm [thread:$0]  %s1884, 128, %s10, [#allocation4]
    $region81: #{tpu_custom_call.1} parent=1 // pred_fallthru
      _
    // Predicated region
    $region82: #{tpu_custom_call.1} parent=1 // pred_check
      _
    $region83: #{tpu_custom_call.1} parent=1 // pred_check_branch
      %1888 = sbr.rel (0) target = $region85
    $region84: #{tpu_custom_call.1} parent=1 // pred_region
      %1889 = dma.done [#allocation4], 128
    $region85: #{tpu_custom_call.1} parent=1 // pred_fallthru
      _
    %1890 = vsyncpa [#allocation3], 1
    %1891 = vsyncpa [#allocation6], 1
    %1892 = vsyncpa [#allocation9], 1
    %1893 = vsyncpa [#allocation12], 1
    %1894 = vsyncpa [#allocation15], 1
    %1895 = vsyncpa [#allocation4], 1

</llo_original>
